<compile_context>
chip_gen: v6e
topology: v6e:2x2x1
jax: 0.10.0
libtpu: 0.0.40
codegen_flags: <defaults>
</compile_context>

<pallas_src>
import jax
import jax.numpy as jnp
from jax.experimental import pallas as pl
from jax.experimental.pallas import tpu as pltpu


H3_PAD = 128   # lane-dense padded width of layer-3 output / layer-4 input
OUT_PAD = 128  # lane-dense padded width of the final layer


def _odornn_kernel(
    x_ref,
    w1_ref, b1_ref,
    w2_ref, b2_ref,
    w3_ref, b3_ref,
    w4_ref, b4_ref,
    o_ref,
):
    # x tile arrives as f32 (no wrapper-side copy); cast to bf16 for the MXU.
    x = x_ref[...].astype(jnp.bfloat16)

    # Layer 1: (fc1 ∘ bn1 folded) -> relu   (dropout = identity in eval)
    # MXU accumulates in f32; bias/ReLU in f32 (v5e has no bf16 VPU path),
    # single fused elementwise pass ending in the bf16 cast for the next matmul.
    h = jnp.dot(x, w1_ref[...], preferred_element_type=jnp.float32)
    h = jnp.maximum(h + b1_ref[...], 0.0).astype(jnp.bfloat16)

    # Layer 2
    h = jnp.dot(h, w2_ref[...], preferred_element_type=jnp.float32)
    h = jnp.maximum(h + b2_ref[...], 0.0).astype(jnp.bfloat16)

    # Layer 3 (output zero-padded 64 -> 128: padded lanes stay exactly 0 after ReLU)
    h = jnp.dot(h, w3_ref[...], preferred_element_type=jnp.float32)
    h = jnp.maximum(h + b3_ref[...], 0.0).astype(jnp.bfloat16)

    # Layer 4: fc4 -> sigmoid (exp + approx reciprocal both land on the EUP slot)
    logits = jnp.dot(h, w4_ref[...], preferred_element_type=jnp.float32) + b4_ref[...]
    o_ref[...] = pl.reciprocal(1.0 + jnp.exp(-logits), approx=True).astype(o_ref.dtype)


def _round_up(n, m):
    return ((n + m - 1) // m) * m


def _choose_tile_b(B, max_tile=512):
    """Batch tile choice:
       - multiple of 8 (sublane tiling) or the whole batch,
       - divides B (avoids a wrapper-side pad copy of x),
       - prefer an even grid of >= 4 steps (v7x: both TCs busy, pipeline steady state),
       - tie-break on the largest tile (amortizes ~0.35 us/step overhead)."""
    if B <= max_tile and (B % 8 != 0 or B <= 8):
        return B  # single full-extent block, no padding needed
    best, best_key = None, None
    t = 8
    while t <= min(B, max_tile):
        if B % t == 0:
            steps = B // t
            key = (steps % 2 == 0 and steps >= 4,  # ideal: even grid of >= 4 steps
                   steps % 2 == 0,                 # ok: even grid (v7x)
                   t)                              # tie-break: biggest tile
            if best_key is None or key > best_key:
                best, best_key = t, key
        t += 8
    if best is not None:
        return best
    # B > max_tile and not a multiple of 8: fall back to a padded last tile.
    return max_tile


def prepare_params(p, eps_already_folded=True):
    """Fold eval-mode BN into weights/bias, cast weights to bf16, and zero-pad
    layer 3 (out 64->128) and layer 4 (in 64->128, out 3->128) to lane-dense
    widths. Padding is numerically exact (padded lanes contribute 0)."""
    q = {}
    for l in (1, 2):
        w = p[f"w{l}"] * p[f"s{l}"]                      # per-output-column scale
        b = p[f"b{l}"] * p[f"s{l}"] + p[f"t{l}"]
        q[f"w{l}"] = w.astype(jnp.bfloat16)
        q[f"b{l}"] = b.astype(jnp.float32)

    # Layer 3: fold BN, then zero-pad output columns 64 -> 128.
    w3 = p["w3"] * p["s3"]
    b3 = p["b3"] * p["s3"] + p["t3"]
    fin3, fout3 = w3.shape
    w3p = jnp.zeros((fin3, H3_PAD), jnp.float32).at[:, :fout3].set(w3)
    b3p = jnp.zeros((1, H3_PAD), jnp.float32).at[:, :fout3].set(b3)
    q["w3"] = w3p.astype(jnp.bfloat16)
    q["b3"] = b3p.astype(jnp.float32)

    # Layer 4: zero-pad input rows 64 -> 128 and output columns 3 -> 128.
    w4, b4 = p["w4"], p["b4"]
    fin4, fout4 = w4.shape
    w4p = jnp.zeros((H3_PAD, OUT_PAD), jnp.float32).at[:fin4, :fout4].set(w4)
    b4p = jnp.zeros((1, OUT_PAD), jnp.float32).at[:, :fout4].set(b4)
    q["w4"] = w4p.astype(jnp.bfloat16)
    q["b4"] = b4p.astype(jnp.float32)
    q["out_dim"] = fout4
    return q


def odornn_forward(x, q, max_tile_b=512):
    """x: [B, input_dim] float32.  q: output of prepare_params()."""
    B, F = x.shape
    out_dim = q["out_dim"]

    tile_b = _choose_tile_b(B, max_tile_b)
    Bp = _round_up(B, tile_b)

    xk = x  # f32 goes straight into the kernel; cast to bf16 happens in-body.
    if Bp != B:
        # TODO(synk): handle the ragged tail with a smaller last tile instead of
        #             a full pad copy (only hit when B > max_tile_b and B % 8 != 0).
        xk = jnp.pad(x, ((0, Bp - B), (0, 0)))

    weight_args = (q["w1"], q["b1"], q["w2"], q["b2"],
                   q["w3"], q["b3"], q["w4"], q["b4"])

    def resident_spec(a):
        # Full-array block, constant index_map -> fetched once, revisited in VMEM.
        return pl.BlockSpec(a.shape, lambda i: (0, 0))

    out = pl.pallas_call(
        _odornn_kernel,
        out_shape=jax.ShapeDtypeStruct((Bp, OUT_PAD), jnp.bfloat16),
        grid=(Bp // tile_b,),
        in_specs=[pl.BlockSpec((tile_b, F), lambda i: (i, 0))]
                 + [resident_spec(a) for a in weight_args],
        out_specs=pl.BlockSpec((tile_b, OUT_PAD), lambda i: (i, 0)),
        compiler_params=pltpu.CompilerParams(
            dimension_semantics=("parallel",),   # shard batch tiles across TCs (v7x)
        ),
    )(xk, *weight_args)

    return out[:B, :out_dim].astype(jnp.float32)


def init_params(key, input_dim=1024, output_dim=3, eps=1e-5):
    """Deterministic synthetic parameters matching OdorNN.__init__ shapes.

    BatchNorm (eval mode) appears as per-feature scale/shift:
      scale = gamma / sqrt(var + eps),  shift = beta - mean * scale.
    """
    dims = [input_dim, 256, 128, 64, output_dim]
    keys = jax.random.split(key, 32)
    ki = iter(range(32))
    p = {}
    for layer in range(1, 5):
        fin, fout = dims[layer - 1], dims[layer]
        w = jax.random.normal(keys[next(ki)], (fin, fout), jnp.float32) * (1.0 / jnp.sqrt(fin))
        b = jax.random.normal(keys[next(ki)], (1, fout), jnp.float32) * 0.01
        p[f"w{layer}"] = w
        p[f"b{layer}"] = b
        if layer <= 3:  # bn1, bn2, bn3
            gamma = 1.0 + 0.1 * jax.random.normal(keys[next(ki)], (1, fout), jnp.float32)
            beta = 0.1 * jax.random.normal(keys[next(ki)], (1, fout), jnp.float32)
            mean = 0.05 * jax.random.normal(keys[next(ki)], (1, fout), jnp.float32)
            var = jnp.abs(1.0 + 0.1 * jax.random.normal(keys[next(ki)], (1, fout), jnp.float32))
            scale = gamma / jnp.sqrt(var + eps)
            shift = beta - mean * scale
            p[f"s{layer}"] = scale
            p[f"t{layer}"] = shift
    return p


def _reference_forward_f32(x, p):
    """Full-precision folded-BN reference (module semantics in eval mode)."""
    h = jnp.maximum((x @ p["w1"] + p["b1"]) * p["s1"] + p["t1"], 0.0)
    h = jnp.maximum((h @ p["w2"] + p["b2"]) * p["s2"] + p["t2"], 0.0)
    h = jnp.maximum((h @ p["w3"] + p["b3"]) * p["s3"] + p["t3"], 0.0)
    return jax.nn.sigmoid(h @ p["w4"] + p["b4"])


def _reference_forward_prepared(x, q):
    """Reference mirroring the kernel's bf16-weight / bf16-activation path."""
    def layer(h, w, b, relu=True):
        y = (h.astype(jnp.bfloat16).astype(jnp.float32)
             @ w.astype(jnp.float32)) + b
        return jnp.maximum(y, 0.0) if relu else y
    h = layer(x, q["w1"], q["b1"])
    h = layer(h, q["w2"], q["b2"])
    h = layer(h, q["w3"], q["b3"])
    logits = layer(h, q["w4"], q["b4"], relu=False)
    return jax.nn.sigmoid(logits)[:, : q["out_dim"]]


if __name__ == "__main__":
    key = jax.random.PRNGKey(0)
    k_x, k_p = jax.random.split(key)

    # Small deterministic example consistent with the module (input_dim fixed by spec).
    B, INPUT_DIM, OUTPUT_DIM = 256, 1024, 3
    x = jax.random.normal(k_x, (B, INPUT_DIM), jnp.float32)
    params = init_params(k_p, INPUT_DIM, OUTPUT_DIM)
    prepared = prepare_params(params)

    out = odornn_forward(x, prepared)            # tile_b=64 -> grid of 4 steps
    out = jax.block_until_ready(out)
    assert out.shape == (B, OUTPUT_DIM)

    # Check vs a reference that uses the same bf16 weights/activations
    # (slack covers the bf16 output writeback + approx-reciprocal sigmoid).
    ref_bf16 = _reference_forward_prepared(x, prepared)
    assert jnp.allclose(out, ref_bf16, atol=1.5e-2, rtol=2e-2), "mismatch vs bf16 reference"

    # Loose check vs the full-precision module semantics (bf16 quantization tolerance).
    ref_f32 = _reference_forward_f32(x, params)
    assert jnp.allclose(out, ref_f32, atol=6e-2, rtol=6e-2), "mismatch vs f32 reference"

    print("KERNEL_OK")
</pallas_src>

<mosaic_0001>
module attributes {stable_mosaic.version = 11 : i64} {
  func.func @_odornn_kernel(%arg0: i32, %arg1: memref<64x1024xf32, #tpu.memory_space<vmem>>, %arg2: memref<1024x256xbf16, #tpu.memory_space<vmem>>, %arg3: memref<1x256xf32, #tpu.memory_space<vmem>>, %arg4: memref<256x128xbf16, #tpu.memory_space<vmem>>, %arg5: memref<1x128xf32, #tpu.memory_space<vmem>>, %arg6: memref<128x128xbf16, #tpu.memory_space<vmem>>, %arg7: memref<1x128xf32, #tpu.memory_space<vmem>>, %arg8: memref<128x128xbf16, #tpu.memory_space<vmem>>, %arg9: memref<1x128xf32, #tpu.memory_space<vmem>>, %arg10: memref<64x128xbf16, #tpu.memory_space<vmem>>) attributes {dimension_semantics = [#tpu.dimension_semantics<parallel>], iteration_bounds = array<i64: 4>, scalar_prefetch = 0 : i64, scratch_operands = 0 : i64, tpu.core_type = #tpu.core_type<tc>, window_params = [{transform_indices = @transform_0, window_bounds = array<i64: 64, 1024>}, {pipeline_mode = #tpu.pipeline_mode<synchronous>, transform_indices = @transform_1, window_bounds = array<i64: 1024, 256>}, {pipeline_mode = #tpu.pipeline_mode<synchronous>, transform_indices = @transform_2, window_bounds = array<i64: 1, 256>}, {pipeline_mode = #tpu.pipeline_mode<synchronous>, transform_indices = @transform_3, window_bounds = array<i64: 256, 128>}, {pipeline_mode = #tpu.pipeline_mode<synchronous>, transform_indices = @transform_4, window_bounds = array<i64: 1, 128>}, {pipeline_mode = #tpu.pipeline_mode<synchronous>, transform_indices = @transform_5, window_bounds = array<i64: 128, 128>}, {pipeline_mode = #tpu.pipeline_mode<synchronous>, transform_indices = @transform_6, window_bounds = array<i64: 1, 128>}, {pipeline_mode = #tpu.pipeline_mode<synchronous>, transform_indices = @transform_7, window_bounds = array<i64: 128, 128>}, {pipeline_mode = #tpu.pipeline_mode<synchronous>, transform_indices = @transform_8, window_bounds = array<i64: 1, 128>}, {transform_indices = @transform_9, window_bounds = array<i64: 64, 128>}]} {
    %c0 = arith.constant 0 : index
    %c0_0 = arith.constant 0 : index
    %0 = vector.load %arg1[%c0, %c0_0] : memref<64x1024xf32, #tpu.memory_space<vmem>>, vector<64x1024xf32>
    %1 = arith.truncf %0 : vector<64x1024xf32> to vector<64x1024xbf16>
    %c0_1 = arith.constant 0 : index
    %c0_2 = arith.constant 0 : index
    %2 = vector.load %arg2[%c0_1, %c0_2] : memref<1024x256xbf16, #tpu.memory_space<vmem>>, vector<1024x256xbf16>
    %cst = arith.constant dense<0.000000e+00> : vector<64x256xf32>
    %3 = tpu.matmul %1, %2, %cst {dimension_numbers = #tpu.dot_dimension_numbers<[1], [0], [0], [1], [0, 0, 1, 1], [], []>} : vector<64x1024xbf16>, vector<1024x256xbf16>, vector<64x256xf32> -> vector<64x256xf32>
    %c0_3 = arith.constant 0 : index
    %c0_4 = arith.constant 0 : index
    %4 = vector.load %arg3[%c0_3, %c0_4] : memref<1x256xf32, #tpu.memory_space<vmem>>, vector<1x256xf32>
    %5 = vector.broadcast %4 : vector<1x256xf32> to vector<64x256xf32>
    %6 = arith.addf %3, %5 : vector<64x256xf32>
    %cst_5 = arith.constant 0.000000e+00 : f32
    %7 = vector.broadcast %cst_5 : f32 to vector<64x256xf32>
    %8 = arith.maximumf %6, %7 : vector<64x256xf32>
    %9 = arith.truncf %8 : vector<64x256xf32> to vector<64x256xbf16>
    %c0_6 = arith.constant 0 : index
    %c0_7 = arith.constant 0 : index
    %10 = vector.load %arg4[%c0_6, %c0_7] : memref<256x128xbf16, #tpu.memory_space<vmem>>, vector<256x128xbf16>
    %cst_8 = arith.constant dense<0.000000e+00> : vector<64x128xf32>
    %11 = tpu.matmul %9, %10, %cst_8 {dimension_numbers = #tpu.dot_dimension_numbers<[1], [0], [0], [1], [0, 0, 1, 1], [], []>} : vector<64x256xbf16>, vector<256x128xbf16>, vector<64x128xf32> -> vector<64x128xf32>
    %c0_9 = arith.constant 0 : index
    %c0_10 = arith.constant 0 : index
    %12 = vector.load %arg5[%c0_9, %c0_10] : memref<1x128xf32, #tpu.memory_space<vmem>>, vector<1x128xf32>
    %13 = vector.broadcast %12 : vector<1x128xf32> to vector<64x128xf32>
    %14 = arith.addf %11, %13 : vector<64x128xf32>
    %cst_11 = arith.constant 0.000000e+00 : f32
    %15 = vector.broadcast %cst_11 : f32 to vector<64x128xf32>
    %16 = arith.maximumf %14, %15 : vector<64x128xf32>
    %17 = arith.truncf %16 : vector<64x128xf32> to vector<64x128xbf16>
    %c0_12 = arith.constant 0 : index
    %c0_13 = arith.constant 0 : index
    %18 = vector.load %arg6[%c0_12, %c0_13] : memref<128x128xbf16, #tpu.memory_space<vmem>>, vector<128x128xbf16>
    %cst_14 = arith.constant dense<0.000000e+00> : vector<64x128xf32>
    %19 = tpu.matmul %17, %18, %cst_14 {dimension_numbers = #tpu.dot_dimension_numbers<[1], [0], [0], [1], [0, 0, 1, 1], [], []>} : vector<64x128xbf16>, vector<128x128xbf16>, vector<64x128xf32> -> vector<64x128xf32>
    %c0_15 = arith.constant 0 : index
    %c0_16 = arith.constant 0 : index
    %20 = vector.load %arg7[%c0_15, %c0_16] : memref<1x128xf32, #tpu.memory_space<vmem>>, vector<1x128xf32>
    %21 = vector.broadcast %20 : vector<1x128xf32> to vector<64x128xf32>
    %22 = arith.addf %19, %21 : vector<64x128xf32>
    %cst_17 = arith.constant 0.000000e+00 : f32
    %23 = vector.broadcast %cst_17 : f32 to vector<64x128xf32>
    %24 = arith.maximumf %22, %23 : vector<64x128xf32>
    %25 = arith.truncf %24 : vector<64x128xf32> to vector<64x128xbf16>
    %c0_18 = arith.constant 0 : index
    %c0_19 = arith.constant 0 : index
    %26 = vector.load %arg8[%c0_18, %c0_19] : memref<128x128xbf16, #tpu.memory_space<vmem>>, vector<128x128xbf16>
    %cst_20 = arith.constant dense<0.000000e+00> : vector<64x128xf32>
    %27 = tpu.matmul %25, %26, %cst_20 {dimension_numbers = #tpu.dot_dimension_numbers<[1], [0], [0], [1], [0, 0, 1, 1], [], []>} : vector<64x128xbf16>, vector<128x128xbf16>, vector<64x128xf32> -> vector<64x128xf32>
    %c0_21 = arith.constant 0 : index
    %c0_22 = arith.constant 0 : index
    %28 = vector.load %arg9[%c0_21, %c0_22] : memref<1x128xf32, #tpu.memory_space<vmem>>, vector<1x128xf32>
    %29 = vector.broadcast %28 : vector<1x128xf32> to vector<64x128xf32>
    %30 = arith.addf %27, %29 : vector<64x128xf32>
    %cst_23 = arith.constant 0.000000e+00 : f32
    %31 = vector.broadcast %cst_23 : f32 to vector<64x128xf32>
    %32 = arith.subf %31, %30 : vector<64x128xf32>
    %33 = math.exp %32 : vector<64x128xf32>
    %cst_24 = arith.constant 1.000000e+00 : f32
    %34 = vector.broadcast %cst_24 : f32 to vector<64x128xf32>
    %35 = arith.addf %34, %33 : vector<64x128xf32>
    %36 = tpu.reciprocal %35 {approx = true} : vector<64x128xf32> -> vector<64x128xf32>
    %37 = arith.truncf %36 : vector<64x128xf32> to vector<64x128xbf16>
    %c0_25 = arith.constant 0 : index
    %c0_26 = arith.constant 0 : index
    %38 = vector.load %arg10[%c0_25, %c0_26] : memref<64x128xbf16, #tpu.memory_space<vmem>>, vector<64x128xbf16>
    tpu.vector_store %arg10[%c0_25, %c0_26], %37 {strides = array<i32>} : memref<64x128xbf16, #tpu.memory_space<vmem>>, vector<64x128xbf16>,
    return
  }
  func.func @transform_0(%arg0: i32) -> (i32, i32) {
    %c0_i32 = arith.constant 0 : i32
    %c0_i32_0 = arith.constant 0 : i32
    return %arg0, %c0_i32 : i32, i32
  }
  func.func @transform_1(%arg0: i32) -> (i32, i32) {
    %c0_i32 = arith.constant 0 : i32
    %c0_i32_0 = arith.constant 0 : i32
    %c0_i32_1 = arith.constant 0 : i32
    return %c0_i32, %c0_i32_0 : i32, i32
  }
  func.func @transform_2(%arg0: i32) -> (i32, i32) {
    %c0_i32 = arith.constant 0 : i32
    %c0_i32_0 = arith.constant 0 : i32
    %c0_i32_1 = arith.constant 0 : i32
    return %c0_i32, %c0_i32_0 : i32, i32
  }
  func.func @transform_3(%arg0: i32) -> (i32, i32) {
    %c0_i32 = arith.constant 0 : i32
    %c0_i32_0 = arith.constant 0 : i32
    %c0_i32_1 = arith.constant 0 : i32
    return %c0_i32, %c0_i32_0 : i32, i32
  }
  func.func @transform_4(%arg0: i32) -> (i32, i32) {
    %c0_i32 = arith.constant 0 : i32
    %c0_i32_0 = arith.constant 0 : i32
    %c0_i32_1 = arith.constant 0 : i32
    return %c0_i32, %c0_i32_0 : i32, i32
  }
  func.func @transform_5(%arg0: i32) -> (i32, i32) {
    %c0_i32 = arith.constant 0 : i32
    %c0_i32_0 = arith.constant 0 : i32
    %c0_i32_1 = arith.constant 0 : i32
    return %c0_i32, %c0_i32_0 : i32, i32
  }
  func.func @transform_6(%arg0: i32) -> (i32, i32) {
    %c0_i32 = arith.constant 0 : i32
    %c0_i32_0 = arith.constant 0 : i32
    %c0_i32_1 = arith.constant 0 : i32
    return %c0_i32, %c0_i32_0 : i32, i32
  }
  func.func @transform_7(%arg0: i32) -> (i32, i32) {
    %c0_i32 = arith.constant 0 : i32
    %c0_i32_0 = arith.constant 0 : i32
    %c0_i32_1 = arith.constant 0 : i32
    return %c0_i32, %c0_i32_0 : i32, i32
  }
  func.func @transform_8(%arg0: i32) -> (i32, i32) {
    %c0_i32 = arith.constant 0 : i32
    %c0_i32_0 = arith.constant 0 : i32
    %c0_i32_1 = arith.constant 0 : i32
    return %c0_i32, %c0_i32_0 : i32, i32
  }
  func.func @transform_9(%arg0: i32) -> (i32, i32) {
    %c0_i32 = arith.constant 0 : i32
    %c0_i32_0 = arith.constant 0 : i32
    return %arg0, %c0_i32 : i32, i32
  }
}

</mosaic_0001>

<llo_original>
// kernel: tpu_custom_call.1
$region0: #{tpu_custom_call.1}
  #allocation0 [shape = 'u32[]', space=smem, size = 0x4, offset = 0x4, fixed_abs, tag = 'smem constant byte address 0x4 - core index']
  #allocation1 [shape = 'u32[144,128]{1,0:T(1,128)}', space=vmem, size = 0x12000, scoped, tag = 'internal scratch']
  %s0 = inlined_call_operand.hbm [shape: f32[256,1024], index: 0, kind: input, shape index: {}]
  %s1 = inlined_call_operand.hbm [shape: bf16[1024,256], index: 1, kind: input, shape index: {}]
  %s2 = inlined_call_operand.vmem [shape: f32[1,256], index: 2, kind: input, shape index: {}]
  %s3 = inlined_call_operand.hbm [shape: bf16[256,128], index: 3, kind: input, shape index: {}]
  %s4 = inlined_call_operand.vmem [shape: f32[1,128], index: 4, kind: input, shape index: {}]
  %s5 = inlined_call_operand.hbm [shape: bf16[128,128], index: 5, kind: input, shape index: {}]
  %s6 = inlined_call_operand.vmem [shape: f32[1,128], index: 6, kind: input, shape index: {}]
  %s7 = inlined_call_operand.hbm [shape: bf16[128,128], index: 7, kind: input, shape index: {}]
  %s8 = inlined_call_operand.vmem [shape: f32[1,128], index: 8, kind: input, shape index: {}]
  %s9 = inlined_call_operand.hbm [shape: bf16[256,128], index: 9, kind: output, shape index: {}]
  %s10 = sld [smem:[#allocation0]]
  $region89: #{tpu_custom_call.1} parent=0
    _
  %s12 = ssub.s32 1, %s10
  %s13 = scalar_select 0, %s12, %s10
  $region1: #{tpu_custom_call.1} parent=0
    #allocation2 [shape = 'u8[524288]{0}', space=vmem, size = 0x80000, scoped, tag = 'input window, operand 0']
    #allocation3 [shape = 's32[2]{0}', space=sflag, size = 0x8, scoped, tag = 'scoped memory for tpu_custom_call.1']
    #allocation4 [shape = 's32[2]{0}', space=sflag, size = 0x8, scoped, tag = 'scoped memory for tpu_custom_call.1']
    #allocation5 [shape = 'u8[524288]{0}', space=vmem, size = 0x80000, scoped, tag = 'input window, operand 1, single buffered']
    #allocation6 [shape = 's32[1]{0}', space=sflag, size = 0x4, scoped, tag = 'scoped memory for tpu_custom_call.1']
    #allocation7 [shape = 'u8[65536]{0}', space=vmem, size = 0x10000, scoped, tag = 'input window, operand 3, single buffered']
    #allocation8 [shape = 'u8[32768]{0}', space=vmem, size = 0x8000, scoped, tag = 'input window, operand 5, single buffered']
    #allocation9 [shape = 's32[1]{0}', space=sflag, size = 0x4, scoped, tag = 'scoped memory for tpu_custom_call.1']
    #allocation10 [shape = 'u8[32768]{0}', space=vmem, size = 0x8000, scoped, tag = 'input window, operand 7, single buffered']
    #allocation11 [shape = 'u8[32768]{0}', space=vmem, size = 0x8000, scoped, tag = 'output window, operand 0']
    %14 = vsyncpa [#allocation3], 0
    %s15 = scalar_lea.sflag [#allocation3], 1
    %16 = vsyncpa %s15, 0
    %17 = vsyncpa [#allocation6], 0
    %18 = vsyncpa [#allocation9], 0
    %19 = vsyncpa [#allocation4], 0
    %s20 = scalar_lea.sflag [#allocation4], 1
    %21 = vsyncpa %s20, 0
    loop: start=0, step=1, limit=6
    $region2: #{tpu_custom_call.1} parent=1 // loop_pre_header
      _
    $region3: #{tpu_custom_call.1} parent=1 // loop_header
      %s23 = sphi 0, %s27
      %p24 = scmp.ge.s32.totalorder %s23, 6
      %s33 = sphi 0, %s35
      %s36 = sphi 0, %s33
      %s37 = sphi 0, %s36
      %s53 = sphi 0, %s37
      %s57 = sphi 0, %s57
      %s59 = sphi 0, %s57
      %s60 = sphi 0, %s59
      %s74 = sphi 0, %s60
      %s78 = sphi 0, %s78
      %s80 = sphi 0, %s78
      %s81 = sphi 0, %s80
      %s95 = sphi 0, %s81
      %s99 = sphi 0, %s99
      %s101 = sphi 0, %s99
      %s102 = sphi 0, %s101
      %s116 = sphi 0, %s102
      %s120 = sphi 0, %s120
      %s122 = sphi 0, %s120
      %s123 = sphi 0, %s122
      %s137 = sphi 0, %s123
      %s141 = sphi 0, %s141
      %s143 = sphi 0, %s141
      %s144 = sphi 0, %s143
      %s158 = sphi 0, %s144
      %s162 = sphi 0, %s162
      %s164 = sphi 0, %s162
      %s165 = sphi 0, %s164
      %s179 = sphi 0, %s165
      %s183 = sphi 0, %s183
      %s185 = sphi 0, %s183
      %s186 = sphi 0, %s185
      %s200 = sphi 0, %s186
      %s204 = sphi 0, %s204
      %s206 = sphi 0, %s204
      %s207 = sphi 0, %s206
      %s221 = sphi 0, %s207
      %s227 = sphi 0, %s229
      %s230 = sphi 0, %s227
      %s231 = sphi 0, %s230
      %s247 = sphi 0, %s231
    $region4: #{tpu_custom_call.1} parent=1 // loop_header_branch
      %26 = sbr.rel (%p24) target = $region8
    $region5: #{tpu_custom_call.1} parent=1 // loop_body
      %s28 = ssub.s32 %s23, 1
      %s29 = ssub.s32 %s23, 2
      %s30 = sadd.s32 %s23, 1
      %s31 = ssub.s32 %s23, %s30
      %p32 = scmp.eq.s32.totalorder %s31, 0
      %s34 = sadd.s32 %s33, 1
      %s35 = scalar_select %p32, %s33, %s34
      %p38 = pneg %p32
      %p39 = scmp.eq.s32.totalorder %s23, 3
      %p40 = por %p38, %p39
      %p41 = scmp.ne.s32.totalorder %s33, %s36
      %p42 = scmp.eq.s32.totalorder %s23, 0
      %p43 = por %p41, %p42
      %p44 = scmp.ne.s32.totalorder %s33, %s36
      %p45 = scmp.eq.s32.totalorder %s28, 3
      %p46 = por %p44, %p45
      %p47 = scmp.ne.s32.totalorder %s36, %s37
      %p48 = scmp.eq.s32.totalorder %s28, 0
      %p49 = por %p47, %p48
      %p50 = scmp.ne.s32.totalorder %s36, %s37
      %p51 = scmp.eq.s32.totalorder %s29, 3
      %p52 = por %p50, %p51
      %p54 = scmp.ne.s32.totalorder %s37, %s53
      %p55 = scmp.eq.s32.totalorder %s29, 0
      %p56 = por %p54, %p55
      %s58 = sadd.s32 %s57, 1
      %p61 = scmp.eq.s32.totalorder %s23, 3
      %p62 = scmp.ne.s32.totalorder %s57, %s59
      %p63 = scmp.eq.s32.totalorder %s23, 0
      %p64 = por %p62, %p63
      %p65 = scmp.ne.s32.totalorder %s57, %s59
      %p66 = scmp.eq.s32.totalorder %s28, 3
      %p67 = por %p65, %p66
      %p68 = scmp.ne.s32.totalorder %s59, %s60
      %p69 = scmp.eq.s32.totalorder %s28, 0
      %p70 = por %p68, %p69
      %p71 = scmp.ne.s32.totalorder %s59, %s60
      %p72 = scmp.eq.s32.totalorder %s29, 3
      %p73 = por %p71, %p72
      %p75 = scmp.ne.s32.totalorder %s60, %s74
      %p76 = scmp.eq.s32.totalorder %s29, 0
      %p77 = por %p75, %p76
      %s79 = sadd.s32 %s78, 1
      %p82 = scmp.eq.s32.totalorder %s23, 3
      %p83 = scmp.ne.s32.totalorder %s78, %s80
      %p84 = scmp.eq.s32.totalorder %s23, 0
      %p85 = por %p83, %p84
      %p86 = scmp.ne.s32.totalorder %s78, %s80
      %p87 = scmp.eq.s32.totalorder %s28, 3
      %p88 = por %p86, %p87
      %p89 = scmp.ne.s32.totalorder %s80, %s81
      %p90 = scmp.eq.s32.totalorder %s28, 0
      %p91 = por %p89, %p90
      %p92 = scmp.ne.s32.totalorder %s80, %s81
      %p93 = scmp.eq.s32.totalorder %s29, 3
      %p94 = por %p92, %p93
      %p96 = scmp.ne.s32.totalorder %s81, %s95
      %p97 = scmp.eq.s32.totalorder %s29, 0
      %p98 = por %p96, %p97
      %s100 = sadd.s32 %s99, 1
      %p103 = scmp.eq.s32.totalorder %s23, 3
      %p104 = scmp.ne.s32.totalorder %s99, %s101
      %p105 = scmp.eq.s32.totalorder %s23, 0
      %p106 = por %p104, %p105
      %p107 = scmp.ne.s32.totalorder %s99, %s101
      %p108 = scmp.eq.s32.totalorder %s28, 3
      %p109 = por %p107, %p108
      %p110 = scmp.ne.s32.totalorder %s101, %s102
      %p111 = scmp.eq.s32.totalorder %s28, 0
      %p112 = por %p110, %p111
      %p113 = scmp.ne.s32.totalorder %s101, %s102
      %p114 = scmp.eq.s32.totalorder %s29, 3
      %p115 = por %p113, %p114
      %p117 = scmp.ne.s32.totalorder %s102, %s116
      %p118 = scmp.eq.s32.totalorder %s29, 0
      %p119 = por %p117, %p118
      %s121 = sadd.s32 %s120, 1
      %p124 = scmp.eq.s32.totalorder %s23, 3
      %p125 = scmp.ne.s32.totalorder %s120, %s122
      %p126 = scmp.eq.s32.totalorder %s23, 0
      %p127 = por %p125, %p126
      %p128 = scmp.ne.s32.totalorder %s120, %s122
      %p129 = scmp.eq.s32.totalorder %s28, 3
      %p130 = por %p128, %p129
      %p131 = scmp.ne.s32.totalorder %s122, %s123
      %p132 = scmp.eq.s32.totalorder %s28, 0
      %p133 = por %p131, %p132
      %p134 = scmp.ne.s32.totalorder %s122, %s123
      %p135 = scmp.eq.s32.totalorder %s29, 3
      %p136 = por %p134, %p135
      %p138 = scmp.ne.s32.totalorder %s123, %s137
      %p139 = scmp.eq.s32.totalorder %s29, 0
      %p140 = por %p138, %p139
      %s142 = sadd.s32 %s141, 1
      %p145 = scmp.eq.s32.totalorder %s23, 3
      %p146 = scmp.ne.s32.totalorder %s141, %s143
      %p147 = scmp.eq.s32.totalorder %s23, 0
      %p148 = por %p146, %p147
      %p149 = scmp.ne.s32.totalorder %s141, %s143
      %p150 = scmp.eq.s32.totalorder %s28, 3
      %p151 = por %p149, %p150
      %p152 = scmp.ne.s32.totalorder %s143, %s144
      %p153 = scmp.eq.s32.totalorder %s28, 0
      %p154 = por %p152, %p153
      %p155 = scmp.ne.s32.totalorder %s143, %s144
      %p156 = scmp.eq.s32.totalorder %s29, 3
      %p157 = por %p155, %p156
      %p159 = scmp.ne.s32.totalorder %s144, %s158
      %p160 = scmp.eq.s32.totalorder %s29, 0
      %p161 = por %p159, %p160
      %s163 = sadd.s32 %s162, 1
      %p166 = scmp.eq.s32.totalorder %s23, 3
      %p167 = scmp.ne.s32.totalorder %s162, %s164
      %p168 = scmp.eq.s32.totalorder %s23, 0
      %p169 = por %p167, %p168
      %p170 = scmp.ne.s32.totalorder %s162, %s164
      %p171 = scmp.eq.s32.totalorder %s28, 3
      %p172 = por %p170, %p171
      %p173 = scmp.ne.s32.totalorder %s164, %s165
      %p174 = scmp.eq.s32.totalorder %s28, 0
      %p175 = por %p173, %p174
      %p176 = scmp.ne.s32.totalorder %s164, %s165
      %p177 = scmp.eq.s32.totalorder %s29, 3
      %p178 = por %p176, %p177
      %p180 = scmp.ne.s32.totalorder %s165, %s179
      %p181 = scmp.eq.s32.totalorder %s29, 0
      %p182 = por %p180, %p181
      %s184 = sadd.s32 %s183, 1
      %p187 = scmp.eq.s32.totalorder %s23, 3
      %p188 = scmp.ne.s32.totalorder %s183, %s185
      %p189 = scmp.eq.s32.totalorder %s23, 0
      %p190 = por %p188, %p189
      %p191 = scmp.ne.s32.totalorder %s183, %s185
      %p192 = scmp.eq.s32.totalorder %s28, 3
      %p193 = por %p191, %p192
      %p194 = scmp.ne.s32.totalorder %s185, %s186
      %p195 = scmp.eq.s32.totalorder %s28, 0
      %p196 = por %p194, %p195
      %p197 = scmp.ne.s32.totalorder %s185, %s186
      %p198 = scmp.eq.s32.totalorder %s29, 3
      %p199 = por %p197, %p198
      %p201 = scmp.ne.s32.totalorder %s186, %s200
      %p202 = scmp.eq.s32.totalorder %s29, 0
      %p203 = por %p201, %p202
      %s205 = sadd.s32 %s204, 1
      %p208 = scmp.eq.s32.totalorder %s23, 3
      %p209 = scmp.ne.s32.totalorder %s204, %s206
      %p210 = scmp.eq.s32.totalorder %s23, 0
      %p211 = por %p209, %p210
      %p212 = scmp.ne.s32.totalorder %s204, %s206
      %p213 = scmp.eq.s32.totalorder %s28, 3
      %p214 = por %p212, %p213
      %p215 = scmp.ne.s32.totalorder %s206, %s207
      %p216 = scmp.eq.s32.totalorder %s28, 0
      %p217 = por %p215, %p216
      %p218 = scmp.ne.s32.totalorder %s206, %s207
      %p219 = scmp.eq.s32.totalorder %s29, 3
      %p220 = por %p218, %p219
      %p222 = scmp.ne.s32.totalorder %s207, %s221
      %p223 = scmp.eq.s32.totalorder %s29, 0
      %p224 = por %p222, %p223
      %s225 = ssub.s32 %s23, %s30
      %p226 = scmp.eq.s32.totalorder %s225, 0
      %s228 = sadd.s32 %s227, 1
      %s229 = scalar_select %p226, %s227, %s228
      %p232 = pneg %p226
      %p233 = scmp.eq.s32.totalorder %s23, 3
      %p234 = por %p232, %p233
      %p235 = scmp.ne.s32.totalorder %s227, %s230
      %p236 = scmp.eq.s32.totalorder %s23, 0
      %p237 = por %p235, %p236
      %p238 = scmp.ne.s32.totalorder %s227, %s230
      %p239 = scmp.eq.s32.totalorder %s28, 3
      %p240 = por %p238, %p239
      %p241 = scmp.ne.s32.totalorder %s230, %s231
      %p242 = scmp.eq.s32.totalorder %s28, 0
      %p243 = por %p241, %p242
      %p244 = scmp.ne.s32.totalorder %s230, %s231
      %p245 = scmp.eq.s32.totalorder %s29, 3
      %p246 = por %p244, %p245
      %p248 = scmp.ne.s32.totalorder %s231, %s247
      %p249 = scmp.eq.s32.totalorder %s29, 0
      %p250 = por %p248, %p249
      %p251 = scmp.le.s32.totalorder 1, %s23
      %p252 = scmp.lt.s32.totalorder %s23, 5
      %p253 = pnand %p251, %p252
      %p254 = pneg %p253
      // Predicated region
      $region9: #{tpu_custom_call.1} parent=5 // pred_check
        _
      $region10: #{tpu_custom_call.1} parent=5 // pred_check_branch
        %256 = sbr.rel (%p253) target = $region12
      $region11: #{tpu_custom_call.1} parent=5 // pred_region
        %s257 = ssub.s32 %s23, 1
        // Predicated region
        $region13: #{tpu_custom_call.1} parent=11 // pred_check
          %p258 = pneg %p70
        $region14: #{tpu_custom_call.1} parent=11 // pred_check_branch
          %260 = sbr.rel (%p258) target = $region16
        $region15: #{tpu_custom_call.1} parent=11 // pred_region
          %s262 = ssub.s32 16384, 16384
          %263 = vsyncadd [#allocation6], %s262
          %s264 = sshll.u32 [#allocation5], 4
          %s265 = int_to_ptr.vmem [resolvable:$true] %s264
          %270 = dma.hbm_to_vmem [thread:$0]  %s1, 16384, %s265, [#allocation6], 128, 128, 8
        $region16: #{tpu_custom_call.1} parent=11 // pred_fallthru
          _
        // Predicated region
        $region17: #{tpu_custom_call.1} parent=11 // pred_check
          %p271 = pneg %p91
        $region18: #{tpu_custom_call.1} parent=11 // pred_check_branch
          %273 = sbr.rel (%p271) target = $region20
        $region19: #{tpu_custom_call.1} parent=11 // pred_region
          _
        $region20: #{tpu_custom_call.1} parent=11 // pred_fallthru
          _
        // Predicated region
        $region21: #{tpu_custom_call.1} parent=11 // pred_check
          %p274 = pneg %p112
        $region22: #{tpu_custom_call.1} parent=11 // pred_check_branch
          %276 = sbr.rel (%p274) target = $region24
        $region23: #{tpu_custom_call.1} parent=11 // pred_region
          %s278 = ssub.s32 2048, 2048
          %279 = vsyncadd [#allocation6], %s278
          %s280 = sshll.u32 [#allocation7], 4
          %s281 = int_to_ptr.vmem [resolvable:$true] %s280
          %286 = dma.hbm_to_vmem [thread:$0]  %s3, 2048, %s281, [#allocation6], 64, 64, 4
        $region24: #{tpu_custom_call.1} parent=11 // pred_fallthru
          _
        // Predicated region
        $region25: #{tpu_custom_call.1} parent=11 // pred_check
          %p287 = pneg %p133
        $region26: #{tpu_custom_call.1} parent=11 // pred_check_branch
          %289 = sbr.rel (%p287) target = $region28
        $region27: #{tpu_custom_call.1} parent=11 // pred_region
          _
        $region28: #{tpu_custom_call.1} parent=11 // pred_fallthru
          _
        // Predicated region
        $region29: #{tpu_custom_call.1} parent=11 // pred_check
          %p290 = pneg %p154
        $region30: #{tpu_custom_call.1} parent=11 // pred_check_branch
          %292 = sbr.rel (%p290) target = $region32
        $region31: #{tpu_custom_call.1} parent=11 // pred_region
          %s294 = ssub.s32 1024, 1024
          %295 = vsyncadd [#allocation9], %s294
          %s296 = sshll.u32 [#allocation8], 4
          %s297 = int_to_ptr.vmem [resolvable:$true] %s296
          %302 = dma.hbm_to_vmem [thread:$0]  %s5, 1024, %s297, [#allocation9], 64, 64, 4
        $region32: #{tpu_custom_call.1} parent=11 // pred_fallthru
          _
        // Predicated region
        $region33: #{tpu_custom_call.1} parent=11 // pred_check
          %p303 = pneg %p175
        $region34: #{tpu_custom_call.1} parent=11 // pred_check_branch
          %305 = sbr.rel (%p303) target = $region36
        $region35: #{tpu_custom_call.1} parent=11 // pred_region
          _
        $region36: #{tpu_custom_call.1} parent=11 // pred_fallthru
          _
        // Predicated region
        $region37: #{tpu_custom_call.1} parent=11 // pred_check
          %p306 = pneg %p196
        $region38: #{tpu_custom_call.1} parent=11 // pred_check_branch
          %308 = sbr.rel (%p306) target = $region40
        $region39: #{tpu_custom_call.1} parent=11 // pred_region
          %s310 = ssub.s32 1024, 1024
          %311 = vsyncadd [#allocation9], %s310
          %s312 = sshll.u32 [#allocation10], 4
          %s313 = int_to_ptr.vmem [resolvable:$true] %s312
          %318 = dma.hbm_to_vmem [thread:$0]  %s7, 1024, %s313, [#allocation9], 64, 64, 4
        $region40: #{tpu_custom_call.1} parent=11 // pred_fallthru
          _
        // Predicated region
        $region41: #{tpu_custom_call.1} parent=11 // pred_check
          %p319 = pneg %p217
        $region42: #{tpu_custom_call.1} parent=11 // pred_check_branch
          %321 = sbr.rel (%p319) target = $region44
        $region43: #{tpu_custom_call.1} parent=11 // pred_region
          _
        $region44: #{tpu_custom_call.1} parent=11 // pred_fallthru
          _
      $region12: #{tpu_custom_call.1} parent=5 // pred_fallthru
        _
      %p322 = scmp.lt.s32.totalorder %s23, 4
      // Predicated region
      $region45: #{tpu_custom_call.1} parent=5 // pred_check
        %p323 = pneg %p322
      $region46: #{tpu_custom_call.1} parent=5 // pred_check_branch
        %325 = sbr.rel (%p323) target = $region48
      $region47: #{tpu_custom_call.1} parent=5 // pred_region
        // Predicated region
        $region49: #{tpu_custom_call.1} parent=47 // pred_check
          %p326 = pneg %p43
        $region50: #{tpu_custom_call.1} parent=47 // pred_check_branch
          %328 = sbr.rel (%p326) target = $region52
        $region51: #{tpu_custom_call.1} parent=47 // pred_region
          %s329 = sand.u32 %s33, 1
          %s330 = scalar_lea.sflag [#allocation3], %s329
          %s331 = sand.u32 %s33, 1
          %s332 = smul.addr %s331, 512
          %s333 = scalar_lea.vmem [#allocation2], %s332
          %s334 = smul.u32 8, %s23
          %s336 = ssub.s32 8192, 8192
          %337 = vsyncadd %s330, %s336
          %s338 = smul.addr %s334, 8
          %s339 = smul.addr %s338, 128
          %s340 = scalar_lea.hbm %s0, %s339
          %s341 = sshll.u32 %s333, 4
          %s342 = int_to_ptr.vmem [resolvable:$true] %s341
          %347 = dma.hbm_to_vmem [thread:$0]  %s340, 8192, %s342, %s330, 1024, 1024, 64
        $region52: #{tpu_custom_call.1} parent=47 // pred_fallthru
          _
      $region48: #{tpu_custom_call.1} parent=5 // pred_fallthru
        _
      %p348 = scmp.le.s32.totalorder 1, %s23
      %p349 = scmp.lt.s32.totalorder %s23, 5
      %p350 = pnand %p348, %p349
      %p351 = pneg %p350
      // Predicated region
      $region53: #{tpu_custom_call.1} parent=5 // pred_check
        _
      $region54: #{tpu_custom_call.1} parent=5 // pred_check_branch
        %353 = sbr.rel (%p350) target = $region56
      $region55: #{tpu_custom_call.1} parent=5 // pred_region
        %s354 = ssub.s32 %s23, 1
        %s355 = sand.u32 %s36, 1
        %s356 = scalar_lea.sflag [#allocation3], %s355
        %s357 = sand.u32 %s36, 1
        %s358 = smul.addr %s357, 512
        %s359 = scalar_lea.vmem [#allocation2], %s358
        // Predicated region
        $region57: #{tpu_custom_call.1} parent=55 // pred_check
          %p360 = pneg %p49
        $region58: #{tpu_custom_call.1} parent=55 // pred_check_branch
          %362 = sbr.rel (%p360) target = $region60
        $region59: #{tpu_custom_call.1} parent=55 // pred_region
          %363 = dma.done %s356, 8192
        $region60: #{tpu_custom_call.1} parent=55 // pred_fallthru
          _
        // Predicated region
        $region61: #{tpu_custom_call.1} parent=55 // pred_check
          %p364 = pneg %p70
        $region62: #{tpu_custom_call.1} parent=55 // pred_check_branch
          %366 = sbr.rel (%p364) target = $region64
        $region63: #{tpu_custom_call.1} parent=55 // pred_region
          %367 = dma.done [#allocation6], 16384
        $region64: #{tpu_custom_call.1} parent=55 // pred_fallthru
          _
        // Predicated region
        $region65: #{tpu_custom_call.1} parent=55 // pred_check
          %p368 = pneg %p112
        $region66: #{tpu_custom_call.1} parent=55 // pred_check_branch
          %370 = sbr.rel (%p368) target = $region68
        $region67: #{tpu_custom_call.1} parent=55 // pred_region
          %371 = dma.done [#allocation6], 2048
        $region68: #{tpu_custom_call.1} parent=55 // pred_fallthru
          _
        // Predicated region
        $region69: #{tpu_custom_call.1} parent=55 // pred_check
          %p372 = pneg %p154
        $region70: #{tpu_custom_call.1} parent=55 // pred_check_branch
          %374 = sbr.rel (%p372) target = $region72
        $region71: #{tpu_custom_call.1} parent=55 // pred_region
          %375 = dma.done [#allocation9], 1024
        $region72: #{tpu_custom_call.1} parent=55 // pred_fallthru
          _
        // Predicated region
        $region73: #{tpu_custom_call.1} parent=55 // pred_check
          %p376 = pneg %p196
        $region74: #{tpu_custom_call.1} parent=55 // pred_check_branch
          %378 = sbr.rel (%p376) target = $region76
        $region75: #{tpu_custom_call.1} parent=55 // pred_region
          %379 = dma.done [#allocation9], 1024
        $region76: #{tpu_custom_call.1} parent=55 // pred_fallthru
          _
        %s380 = sand.u32 %s36, 1
        %s381 = scalar_lea.sflag [#allocation3], %s380
        %s382 = sand.u32 %s36, 1
        %s383 = smul.addr %s382, 512
        %s384 = scalar_lea.vmem [#allocation2], %s383
        %p385 = pneg %p49
        %p386 = pneg %p46
        %p387 = pneg %p70
        %p388 = pneg %p67
        %p389 = pneg %p91
        %p390 = pneg %p88
        %p391 = pneg %p112
        %p392 = pneg %p109
        %p393 = pneg %p133
        %p394 = pneg %p130
        %p395 = pneg %p154
        %p396 = pneg %p151
        %p397 = pneg %p175
        %p398 = pneg %p172
        %p399 = pneg %p196
        %p400 = pneg %p193
        %p401 = pneg %p217
        %p402 = pneg %p214
        %p403 = pneg %p243
        %p404 = pneg %p240
        %s405 = sand.u32 %s230, 1
        %s406 = scalar_lea.sflag [#allocation4], %s405
        %s407 = sand.u32 %s230, 1
        %s408 = smul.addr %s407, 32
        %s409 = scalar_lea.vmem [#allocation11], %s408
        %s410 = smul.u32 8, %s28
        %s411 = smul.u32 8, %s28
        %v413 = vld [vmem:[%s359] sm:$0xff]
        %v414 = vld [vmem:[%s359 + $0x8] sm:$0xff]
        %v415 = vld [vmem:[%s359 + $0x10] sm:$0xff]
        %v416 = vld [vmem:[%s359 + $0x18] sm:$0xff]
        %v417 = vld [vmem:[%s359 + $0x20] sm:$0xff]
        %v418 = vld [vmem:[%s359 + $0x28] sm:$0xff]
        %v419 = vld [vmem:[%s359 + $0x30] sm:$0xff]
        %v420 = vld [vmem:[%s359 + $0x38] sm:$0xff]
        %v421 = vld [vmem:[%s359 + $0x40] sm:$0xff]
        %v422 = vld [vmem:[%s359 + $0x48] sm:$0xff]
        %v423 = vld [vmem:[%s359 + $0x50] sm:$0xff]
        %v424 = vld [vmem:[%s359 + $0x58] sm:$0xff]
        %v425 = vld [vmem:[%s359 + $0x60] sm:$0xff]
        %v426 = vld [vmem:[%s359 + $0x68] sm:$0xff]
        %v427 = vld [vmem:[%s359 + $0x70] sm:$0xff]
        %v428 = vld [vmem:[%s359 + $0x78] sm:$0xff]
        %v429 = vld [vmem:[%s359 + $0x80] sm:$0xff]
        %v430 = vld [vmem:[%s359 + $0x88] sm:$0xff]
        %v431 = vld [vmem:[%s359 + $0x90] sm:$0xff]
        %v432 = vld [vmem:[%s359 + $0x98] sm:$0xff]
        %v433 = vld [vmem:[%s359 + $0xa0] sm:$0xff]
        %v434 = vld [vmem:[%s359 + $0xa8] sm:$0xff]
        %v435 = vld [vmem:[%s359 + $0xb0] sm:$0xff]
        %v436 = vld [vmem:[%s359 + $0xb8] sm:$0xff]
        %v437 = vld [vmem:[%s359 + $0xc0] sm:$0xff]
        %v438 = vld [vmem:[%s359 + $0xc8] sm:$0xff]
        %v439 = vld [vmem:[%s359 + $0xd0] sm:$0xff]
        %v440 = vld [vmem:[%s359 + $0xd8] sm:$0xff]
        %v441 = vld [vmem:[%s359 + $0xe0] sm:$0xff]
        %v442 = vld [vmem:[%s359 + $0xe8] sm:$0xff]
        %v443 = vld [vmem:[%s359 + $0xf0] sm:$0xff]
        %v444 = vld [vmem:[%s359 + $0xf8] sm:$0xff]
        %v445 = vld [vmem:[%s359 + $0x100] sm:$0xff]
        %v446 = vld [vmem:[%s359 + $0x108] sm:$0xff]
        %v447 = vld [vmem:[%s359 + $0x110] sm:$0xff]
        %v448 = vld [vmem:[%s359 + $0x118] sm:$0xff]
        %v449 = vld [vmem:[%s359 + $0x120] sm:$0xff]
        %v450 = vld [vmem:[%s359 + $0x128] sm:$0xff]
        %v451 = vld [vmem:[%s359 + $0x130] sm:$0xff]
        %v452 = vld [vmem:[%s359 + $0x138] sm:$0xff]
        %v453 = vld [vmem:[%s359 + $0x140] sm:$0xff]
        %v454 = vld [vmem:[%s359 + $0x148] sm:$0xff]
        %v455 = vld [vmem:[%s359 + $0x150] sm:$0xff]
        %v456 = vld [vmem:[%s359 + $0x158] sm:$0xff]
        %v457 = vld [vmem:[%s359 + $0x160] sm:$0xff]
        %v458 = vld [vmem:[%s359 + $0x168] sm:$0xff]
        %v459 = vld [vmem:[%s359 + $0x170] sm:$0xff]
        %v460 = vld [vmem:[%s359 + $0x178] sm:$0xff]
        %v461 = vld [vmem:[%s359 + $0x180] sm:$0xff]
        %v462 = vld [vmem:[%s359 + $0x188] sm:$0xff]
        %v463 = vld [vmem:[%s359 + $0x190] sm:$0xff]
        %v464 = vld [vmem:[%s359 + $0x198] sm:$0xff]
        %v465 = vld [vmem:[%s359 + $0x1a0] sm:$0xff]
        %v466 = vld [vmem:[%s359 + $0x1a8] sm:$0xff]
        %v467 = vld [vmem:[%s359 + $0x1b0] sm:$0xff]
        %v468 = vld [vmem:[%s359 + $0x1b8] sm:$0xff]
        %v469 = vld [vmem:[%s359 + $0x1c0] sm:$0xff]
        %v470 = vld [vmem:[%s359 + $0x1c8] sm:$0xff]
        %v471 = vld [vmem:[%s359 + $0x1d0] sm:$0xff]
        %v472 = vld [vmem:[%s359 + $0x1d8] sm:$0xff]
        %v473 = vld [vmem:[%s359 + $0x1e0] sm:$0xff]
        %v474 = vld [vmem:[%s359 + $0x1e8] sm:$0xff]
        %v475 = vld [vmem:[%s359 + $0x1f0] sm:$0xff]
        %v476 = vld [vmem:[%s359 + $0x1f8] sm:$0xff]
        %v477 = vpack.c.bf16 %v421, %v413
        %v478 = vpack.c.bf16 %v422, %v414
        %v479 = vpack.c.bf16 %v423, %v415
        %v480 = vpack.c.bf16 %v424, %v416
        %v481 = vpack.c.bf16 %v425, %v417
        %v482 = vpack.c.bf16 %v426, %v418
        %v483 = vpack.c.bf16 %v427, %v419
        %v484 = vpack.c.bf16 %v428, %v420
        %v485 = vpack.c.bf16 %v437, %v429
        %v486 = vpack.c.bf16 %v438, %v430
        %v487 = vpack.c.bf16 %v439, %v431
        %v488 = vpack.c.bf16 %v440, %v432
        %v489 = vpack.c.bf16 %v441, %v433
        %v490 = vpack.c.bf16 %v442, %v434
        %v491 = vpack.c.bf16 %v443, %v435
        %v492 = vpack.c.bf16 %v444, %v436
        %v493 = vpack.c.bf16 %v453, %v445
        %v494 = vpack.c.bf16 %v454, %v446
        %v495 = vpack.c.bf16 %v455, %v447
        %v496 = vpack.c.bf16 %v456, %v448
        %v497 = vpack.c.bf16 %v457, %v449
        %v498 = vpack.c.bf16 %v458, %v450
        %v499 = vpack.c.bf16 %v459, %v451
        %v500 = vpack.c.bf16 %v460, %v452
        %v501 = vpack.c.bf16 %v469, %v461
        %v502 = vpack.c.bf16 %v470, %v462
        %v503 = vpack.c.bf16 %v471, %v463
        %v504 = vpack.c.bf16 %v472, %v464
        %v505 = vpack.c.bf16 %v473, %v465
        %v506 = vpack.c.bf16 %v474, %v466
        %v507 = vpack.c.bf16 %v475, %v467
        %v508 = vpack.c.bf16 %v476, %v468
        %v509 = vld [vmem:[#allocation5] sm:$0xff]
        %v510 = vld [vmem:[#allocation5 + $0x8] sm:$0xff]
        %v511 = vld [vmem:[#allocation5 + $0x10] sm:$0xff]
        %v512 = vld [vmem:[#allocation5 + $0x18] sm:$0xff]
        %v513 = vld [vmem:[#allocation5 + $0x20] sm:$0xff]
        %v514 = vld [vmem:[#allocation5 + $0x28] sm:$0xff]
        %v515 = vld [vmem:[#allocation5 + $0x30] sm:$0xff]
        %v516 = vld [vmem:[#allocation5 + $0x38] sm:$0xff]
        %v517 = vld [vmem:[#allocation5 + $0x40] sm:$0xff]
        %v518 = vld [vmem:[#allocation5 + $0x48] sm:$0xff]
        %v519 = vld [vmem:[#allocation5 + $0x50] sm:$0xff]
        %v520 = vld [vmem:[#allocation5 + $0x58] sm:$0xff]
        %v521 = vld [vmem:[#allocation5 + $0x60] sm:$0xff]
        %v522 = vld [vmem:[#allocation5 + $0x68] sm:$0xff]
        %v523 = vld [vmem:[#allocation5 + $0x70] sm:$0xff]
        %v524 = vld [vmem:[#allocation5 + $0x78] sm:$0xff]
        %v525 = vld [vmem:[#allocation5 + $0x80] sm:$0xff]
        %v526 = vld [vmem:[#allocation5 + $0x88] sm:$0xff]
        %v527 = vld [vmem:[#allocation5 + $0x90] sm:$0xff]
        %v528 = vld [vmem:[#allocation5 + $0x98] sm:$0xff]
        %v529 = vld [vmem:[#allocation5 + $0xa0] sm:$0xff]
        %v530 = vld [vmem:[#allocation5 + $0xa8] sm:$0xff]
        %v531 = vld [vmem:[#allocation5 + $0xb0] sm:$0xff]
        %v532 = vld [vmem:[#allocation5 + $0xb8] sm:$0xff]
        %v533 = vld [vmem:[#allocation5 + $0xc0] sm:$0xff]
        %v534 = vld [vmem:[#allocation5 + $0xc8] sm:$0xff]
        %v535 = vld [vmem:[#allocation5 + $0xd0] sm:$0xff]
        %v536 = vld [vmem:[#allocation5 + $0xd8] sm:$0xff]
        %v537 = vld [vmem:[#allocation5 + $0xe0] sm:$0xff]
        %v538 = vld [vmem:[#allocation5 + $0xe8] sm:$0xff]
        %v539 = vld [vmem:[#allocation5 + $0xf0] sm:$0xff]
        %v540 = vld [vmem:[#allocation5 + $0xf8] sm:$0xff]
        %v541 = vld [vmem:[#allocation5 + $0x100] sm:$0xff]
        %v542 = vld [vmem:[#allocation5 + $0x108] sm:$0xff]
        %v543 = vld [vmem:[#allocation5 + $0x110] sm:$0xff]
        %v544 = vld [vmem:[#allocation5 + $0x118] sm:$0xff]
        %v545 = vld [vmem:[#allocation5 + $0x120] sm:$0xff]
        %v546 = vld [vmem:[#allocation5 + $0x128] sm:$0xff]
        %v547 = vld [vmem:[#allocation5 + $0x130] sm:$0xff]
        %v548 = vld [vmem:[#allocation5 + $0x138] sm:$0xff]
        %v549 = vld [vmem:[#allocation5 + $0x140] sm:$0xff]
        %v550 = vld [vmem:[#allocation5 + $0x148] sm:$0xff]
        %v551 = vld [vmem:[#allocation5 + $0x150] sm:$0xff]
        %v552 = vld [vmem:[#allocation5 + $0x158] sm:$0xff]
        %v553 = vld [vmem:[#allocation5 + $0x160] sm:$0xff]
        %v554 = vld [vmem:[#allocation5 + $0x168] sm:$0xff]
        %v555 = vld [vmem:[#allocation5 + $0x170] sm:$0xff]
        %v556 = vld [vmem:[#allocation5 + $0x178] sm:$0xff]
        %v557 = vld [vmem:[#allocation5 + $0x180] sm:$0xff]
        %v558 = vld [vmem:[#allocation5 + $0x188] sm:$0xff]
        %v559 = vld [vmem:[#allocation5 + $0x190] sm:$0xff]
        %v560 = vld [vmem:[#allocation5 + $0x198] sm:$0xff]
        %v561 = vld [vmem:[#allocation5 + $0x1a0] sm:$0xff]
        %v562 = vld [vmem:[#allocation5 + $0x1a8] sm:$0xff]
        %v563 = vld [vmem:[#allocation5 + $0x1b0] sm:$0xff]
        %v564 = vld [vmem:[#allocation5 + $0x1b8] sm:$0xff]
        %v565 = vld [vmem:[#allocation5 + $0x1c0] sm:$0xff]
        %v566 = vld [vmem:[#allocation5 + $0x1c8] sm:$0xff]
        %v567 = vld [vmem:[#allocation5 + $0x1d0] sm:$0xff]
        %v568 = vld [vmem:[#allocation5 + $0x1d8] sm:$0xff]
        %v569 = vld [vmem:[#allocation5 + $0x1e0] sm:$0xff]
        %v570 = vld [vmem:[#allocation5 + $0x1e8] sm:$0xff]
        %v571 = vld [vmem:[#allocation5 + $0x1f0] sm:$0xff]
        %v572 = vld [vmem:[#allocation5 + $0x1f8] sm:$0xff]
        %v573 = vld [vmem:[#allocation5 + $0x200] sm:$0xff]
        %v574 = vld [vmem:[#allocation5 + $0x208] sm:$0xff]
        %v575 = vld [vmem:[#allocation5 + $0x210] sm:$0xff]
        %v576 = vld [vmem:[#allocation5 + $0x218] sm:$0xff]
        %v577 = vld [vmem:[#allocation5 + $0x220] sm:$0xff]
        %v578 = vld [vmem:[#allocation5 + $0x228] sm:$0xff]
        %v579 = vld [vmem:[#allocation5 + $0x230] sm:$0xff]
        %v580 = vld [vmem:[#allocation5 + $0x238] sm:$0xff]
        %v581 = vld [vmem:[#allocation5 + $0x240] sm:$0xff]
        %v582 = vld [vmem:[#allocation5 + $0x248] sm:$0xff]
        %v583 = vld [vmem:[#allocation5 + $0x250] sm:$0xff]
        %v584 = vld [vmem:[#allocation5 + $0x258] sm:$0xff]
        %v585 = vld [vmem:[#allocation5 + $0x260] sm:$0xff]
        %v586 = vld [vmem:[#allocation5 + $0x268] sm:$0xff]
        %v587 = vld [vmem:[#allocation5 + $0x270] sm:$0xff]
        %v588 = vld [vmem:[#allocation5 + $0x278] sm:$0xff]
        %v589 = vld [vmem:[#allocation5 + $0x280] sm:$0xff]
        %v590 = vld [vmem:[#allocation5 + $0x288] sm:$0xff]
        %v591 = vld [vmem:[#allocation5 + $0x290] sm:$0xff]
        %v592 = vld [vmem:[#allocation5 + $0x298] sm:$0xff]
        %v593 = vld [vmem:[#allocation5 + $0x2a0] sm:$0xff]
        %v594 = vld [vmem:[#allocation5 + $0x2a8] sm:$0xff]
        %v595 = vld [vmem:[#allocation5 + $0x2b0] sm:$0xff]
        %v596 = vld [vmem:[#allocation5 + $0x2b8] sm:$0xff]
        %v597 = vld [vmem:[#allocation5 + $0x2c0] sm:$0xff]
        %v598 = vld [vmem:[#allocation5 + $0x2c8] sm:$0xff]
        %v599 = vld [vmem:[#allocation5 + $0x2d0] sm:$0xff]
        %v600 = vld [vmem:[#allocation5 + $0x2d8] sm:$0xff]
        %v601 = vld [vmem:[#allocation5 + $0x2e0] sm:$0xff]
        %v602 = vld [vmem:[#allocation5 + $0x2e8] sm:$0xff]
        %v603 = vld [vmem:[#allocation5 + $0x2f0] sm:$0xff]
        %v604 = vld [vmem:[#allocation5 + $0x2f8] sm:$0xff]
        %v605 = vld [vmem:[#allocation5 + $0x300] sm:$0xff]
        %v606 = vld [vmem:[#allocation5 + $0x308] sm:$0xff]
        %v607 = vld [vmem:[#allocation5 + $0x310] sm:$0xff]
        %v608 = vld [vmem:[#allocation5 + $0x318] sm:$0xff]
        %v609 = vld [vmem:[#allocation5 + $0x320] sm:$0xff]
        %v610 = vld [vmem:[#allocation5 + $0x328] sm:$0xff]
        %v611 = vld [vmem:[#allocation5 + $0x330] sm:$0xff]
        %v612 = vld [vmem:[#allocation5 + $0x338] sm:$0xff]
        %v613 = vld [vmem:[#allocation5 + $0x340] sm:$0xff]
        %v614 = vld [vmem:[#allocation5 + $0x348] sm:$0xff]
        %v615 = vld [vmem:[#allocation5 + $0x350] sm:$0xff]
        %v616 = vld [vmem:[#allocation5 + $0x358] sm:$0xff]
        %v617 = vld [vmem:[#allocation5 + $0x360] sm:$0xff]
        %v618 = vld [vmem:[#allocation5 + $0x368] sm:$0xff]
        %v619 = vld [vmem:[#allocation5 + $0x370] sm:$0xff]
        %v620 = vld [vmem:[#allocation5 + $0x378] sm:$0xff]
        %v621 = vld [vmem:[#allocation5 + $0x380] sm:$0xff]
        %v622 = vld [vmem:[#allocation5 + $0x388] sm:$0xff]
        %v623 = vld [vmem:[#allocation5 + $0x390] sm:$0xff]
        %v624 = vld [vmem:[#allocation5 + $0x398] sm:$0xff]
        %v625 = vld [vmem:[#allocation5 + $0x3a0] sm:$0xff]
        %v626 = vld [vmem:[#allocation5 + $0x3a8] sm:$0xff]
        %v627 = vld [vmem:[#allocation5 + $0x3b0] sm:$0xff]
        %v628 = vld [vmem:[#allocation5 + $0x3b8] sm:$0xff]
        %v629 = vld [vmem:[#allocation5 + $0x3c0] sm:$0xff]
        %v630 = vld [vmem:[#allocation5 + $0x3c8] sm:$0xff]
        %v631 = vld [vmem:[#allocation5 + $0x3d0] sm:$0xff]
        %v632 = vld [vmem:[#allocation5 + $0x3d8] sm:$0xff]
        %v633 = vld [vmem:[#allocation5 + $0x3e0] sm:$0xff]
        %v634 = vld [vmem:[#allocation5 + $0x3e8] sm:$0xff]
        %v635 = vld [vmem:[#allocation5 + $0x3f0] sm:$0xff]
        %v636 = vld [vmem:[#allocation5 + $0x3f8] sm:$0xff]
        %v637 = vld [vmem:[%s2] sm:$0x3]
        %v639 = vlaneseq
        %v640 = vshrl.u32 %v639, 7
        %v641 = vsub.s32 0, %v640
        %v642 = vrot.slane %v637, %v641
        %v643 = vlaneseq
        %v644 = vshrl.u32 %v643, 7
        %v645 = vsub.s32 1, %v644
        %v646 = vrot.slane %v637, %v645
        %v777 = vunpack.c.l.b16 %v509
        %v778 = vunpack.c.h.b16 %v509
        %v779 = vunpack.c.l.b16 %v510
        %v780 = vunpack.c.h.b16 %v510
        %v781 = vunpack.c.l.b16 %v511
        %v782 = vunpack.c.h.b16 %v511
        %v783 = vunpack.c.l.b16 %v512
        %v784 = vunpack.c.h.b16 %v512
        %v785 = vunpack.c.l.b16 %v513
        %v786 = vunpack.c.h.b16 %v513
        %v787 = vunpack.c.l.b16 %v514
        %v788 = vunpack.c.h.b16 %v514
        %v789 = vunpack.c.l.b16 %v515
        %v790 = vunpack.c.h.b16 %v515
        %v791 = vunpack.c.l.b16 %v516
        %v792 = vunpack.c.h.b16 %v516
        %v793 = vunpack.c.l.b16 %v517
        %v794 = vunpack.c.h.b16 %v517
        %v795 = vunpack.c.l.b16 %v518
        %v796 = vunpack.c.h.b16 %v518
        %v797 = vunpack.c.l.b16 %v519
        %v798 = vunpack.c.h.b16 %v519
        %v799 = vunpack.c.l.b16 %v520
        %v800 = vunpack.c.h.b16 %v520
        %v801 = vunpack.c.l.b16 %v521
        %v802 = vunpack.c.h.b16 %v521
        %v803 = vunpack.c.l.b16 %v522
        %v804 = vunpack.c.h.b16 %v522
        %v805 = vunpack.c.l.b16 %v523
        %v806 = vunpack.c.h.b16 %v523
        %v807 = vunpack.c.l.b16 %v524
        %v808 = vunpack.c.h.b16 %v524
        %v809 = vunpack.c.l.b16 %v525
        %v810 = vunpack.c.h.b16 %v525
        %v811 = vunpack.c.l.b16 %v526
        %v812 = vunpack.c.h.b16 %v526
        %v813 = vunpack.c.l.b16 %v527
        %v814 = vunpack.c.h.b16 %v527
        %v815 = vunpack.c.l.b16 %v528
        %v816 = vunpack.c.h.b16 %v528
        %v817 = vunpack.c.l.b16 %v529
        %v818 = vunpack.c.h.b16 %v529
        %v819 = vunpack.c.l.b16 %v530
        %v820 = vunpack.c.h.b16 %v530
        %v821 = vunpack.c.l.b16 %v531
        %v822 = vunpack.c.h.b16 %v531
        %v823 = vunpack.c.l.b16 %v532
        %v824 = vunpack.c.h.b16 %v532
        %v825 = vunpack.c.l.b16 %v533
        %v826 = vunpack.c.h.b16 %v533
        %v827 = vunpack.c.l.b16 %v534
        %v828 = vunpack.c.h.b16 %v534
        %v829 = vunpack.c.l.b16 %v535
        %v830 = vunpack.c.h.b16 %v535
        %v831 = vunpack.c.l.b16 %v536
        %v832 = vunpack.c.h.b16 %v536
        %v833 = vunpack.c.l.b16 %v537
        %v834 = vunpack.c.h.b16 %v537
        %v835 = vunpack.c.l.b16 %v538
        %v836 = vunpack.c.h.b16 %v538
        %v837 = vunpack.c.l.b16 %v539
        %v838 = vunpack.c.h.b16 %v539
        %v839 = vunpack.c.l.b16 %v540
        %v840 = vunpack.c.h.b16 %v540
        %v841 = vunpack.c.l.b16 %v541
        %v842 = vunpack.c.h.b16 %v541
        %v843 = vunpack.c.l.b16 %v542
        %v844 = vunpack.c.h.b16 %v542
        %v845 = vunpack.c.l.b16 %v543
        %v846 = vunpack.c.h.b16 %v543
        %v847 = vunpack.c.l.b16 %v544
        %v848 = vunpack.c.h.b16 %v544
        %v849 = vunpack.c.l.b16 %v545
        %v850 = vunpack.c.h.b16 %v545
        %v851 = vunpack.c.l.b16 %v546
        %v852 = vunpack.c.h.b16 %v546
        %v853 = vunpack.c.l.b16 %v547
        %v854 = vunpack.c.h.b16 %v547
        %v855 = vunpack.c.l.b16 %v548
        %v856 = vunpack.c.h.b16 %v548
        %v857 = vunpack.c.l.b16 %v549
        %v858 = vunpack.c.h.b16 %v549
        %v859 = vunpack.c.l.b16 %v550
        %v860 = vunpack.c.h.b16 %v550
        %v861 = vunpack.c.l.b16 %v551
        %v862 = vunpack.c.h.b16 %v551
        %v863 = vunpack.c.l.b16 %v552
        %v864 = vunpack.c.h.b16 %v552
        %v865 = vunpack.c.l.b16 %v553
        %v866 = vunpack.c.h.b16 %v553
        %v867 = vunpack.c.l.b16 %v554
        %v868 = vunpack.c.h.b16 %v554
        %v869 = vunpack.c.l.b16 %v555
        %v870 = vunpack.c.h.b16 %v555
        %v871 = vunpack.c.l.b16 %v556
        %v872 = vunpack.c.h.b16 %v556
        %v873 = vunpack.c.l.b16 %v557
        %v874 = vunpack.c.h.b16 %v557
        %v875 = vunpack.c.l.b16 %v558
        %v876 = vunpack.c.h.b16 %v558
        %v877 = vunpack.c.l.b16 %v559
        %v878 = vunpack.c.h.b16 %v559
        %v879 = vunpack.c.l.b16 %v560
        %v880 = vunpack.c.h.b16 %v560
        %v881 = vunpack.c.l.b16 %v561
        %v882 = vunpack.c.h.b16 %v561
        %v883 = vunpack.c.l.b16 %v562
        %v884 = vunpack.c.h.b16 %v562
        %v885 = vunpack.c.l.b16 %v563
        %v886 = vunpack.c.h.b16 %v563
        %v887 = vunpack.c.l.b16 %v564
        %v888 = vunpack.c.h.b16 %v564
        %v889 = vunpack.c.l.b16 %v565
        %v890 = vunpack.c.h.b16 %v565
        %v891 = vunpack.c.l.b16 %v566
        %v892 = vunpack.c.h.b16 %v566
        %v893 = vunpack.c.l.b16 %v567
        %v894 = vunpack.c.h.b16 %v567
        %v895 = vunpack.c.l.b16 %v568
        %v896 = vunpack.c.h.b16 %v568
        %v897 = vunpack.c.l.b16 %v569
        %v898 = vunpack.c.h.b16 %v569
        %v899 = vunpack.c.l.b16 %v570
        %v900 = vunpack.c.h.b16 %v570
        %v901 = vunpack.c.l.b16 %v571
        %v902 = vunpack.c.h.b16 %v571
        %v903 = vunpack.c.l.b16 %v572
        %v904 = vunpack.c.h.b16 %v572
        %v905 = vunpack.c.l.b16 %v573
        %v906 = vunpack.c.h.b16 %v573
        %v907 = vunpack.c.l.b16 %v574
        %v908 = vunpack.c.h.b16 %v574
        %v909 = vunpack.c.l.b16 %v575
        %v910 = vunpack.c.h.b16 %v575
        %v911 = vunpack.c.l.b16 %v576
        %v912 = vunpack.c.h.b16 %v576
        %v913 = vunpack.c.l.b16 %v577
        %v914 = vunpack.c.h.b16 %v577
        %v915 = vunpack.c.l.b16 %v578
        %v916 = vunpack.c.h.b16 %v578
        %v917 = vunpack.c.l.b16 %v579
        %v918 = vunpack.c.h.b16 %v579
        %v919 = vunpack.c.l.b16 %v580
        %v920 = vunpack.c.h.b16 %v580
        %v921 = vunpack.c.l.b16 %v581
        %v922 = vunpack.c.h.b16 %v581
        %v923 = vunpack.c.l.b16 %v582
        %v924 = vunpack.c.h.b16 %v582
        %v925 = vunpack.c.l.b16 %v583
        %v926 = vunpack.c.h.b16 %v583
        %v927 = vunpack.c.l.b16 %v584
        %v928 = vunpack.c.h.b16 %v584
        %v929 = vunpack.c.l.b16 %v585
        %v930 = vunpack.c.h.b16 %v585
        %v931 = vunpack.c.l.b16 %v586
        %v932 = vunpack.c.h.b16 %v586
        %v933 = vunpack.c.l.b16 %v587
        %v934 = vunpack.c.h.b16 %v587
        %v935 = vunpack.c.l.b16 %v588
        %v936 = vunpack.c.h.b16 %v588
        %v937 = vunpack.c.l.b16 %v589
        %v938 = vunpack.c.h.b16 %v589
        %v939 = vunpack.c.l.b16 %v590
        %v940 = vunpack.c.h.b16 %v590
        %v941 = vunpack.c.l.b16 %v591
        %v942 = vunpack.c.h.b16 %v591
        %v943 = vunpack.c.l.b16 %v592
        %v944 = vunpack.c.h.b16 %v592
        %v945 = vunpack.c.l.b16 %v593
        %v946 = vunpack.c.h.b16 %v593
        %v947 = vunpack.c.l.b16 %v594
        %v948 = vunpack.c.h.b16 %v594
        %v949 = vunpack.c.l.b16 %v595
        %v950 = vunpack.c.h.b16 %v595
        %v951 = vunpack.c.l.b16 %v596
        %v952 = vunpack.c.h.b16 %v596
        %v953 = vunpack.c.l.b16 %v597
        %v954 = vunpack.c.h.b16 %v597
        %v955 = vunpack.c.l.b16 %v598
        %v956 = vunpack.c.h.b16 %v598
        %v957 = vunpack.c.l.b16 %v599
        %v958 = vunpack.c.h.b16 %v599
        %v959 = vunpack.c.l.b16 %v600
        %v960 = vunpack.c.h.b16 %v600
        %v961 = vunpack.c.l.b16 %v601
        %v962 = vunpack.c.h.b16 %v601
        %v963 = vunpack.c.l.b16 %v602
        %v964 = vunpack.c.h.b16 %v602
        %v965 = vunpack.c.l.b16 %v603
        %v966 = vunpack.c.h.b16 %v603
        %v967 = vunpack.c.l.b16 %v604
        %v968 = vunpack.c.h.b16 %v604
        %v969 = vunpack.c.l.b16 %v605
        %v970 = vunpack.c.h.b16 %v605
        %v971 = vunpack.c.l.b16 %v606
        %v972 = vunpack.c.h.b16 %v606
        %v973 = vunpack.c.l.b16 %v607
        %v974 = vunpack.c.h.b16 %v607
        %v975 = vunpack.c.l.b16 %v608
        %v976 = vunpack.c.h.b16 %v608
        %v977 = vunpack.c.l.b16 %v609
        %v978 = vunpack.c.h.b16 %v609
        %v979 = vunpack.c.l.b16 %v610
        %v980 = vunpack.c.h.b16 %v610
        %v981 = vunpack.c.l.b16 %v611
        %v982 = vunpack.c.h.b16 %v611
        %v983 = vunpack.c.l.b16 %v612
        %v984 = vunpack.c.h.b16 %v612
        %v985 = vunpack.c.l.b16 %v613
        %v986 = vunpack.c.h.b16 %v613
        %v987 = vunpack.c.l.b16 %v614
        %v988 = vunpack.c.h.b16 %v614
        %v989 = vunpack.c.l.b16 %v615
        %v990 = vunpack.c.h.b16 %v615
        %v991 = vunpack.c.l.b16 %v616
        %v992 = vunpack.c.h.b16 %v616
        %v993 = vunpack.c.l.b16 %v617
        %v994 = vunpack.c.h.b16 %v617
        %v995 = vunpack.c.l.b16 %v618
        %v996 = vunpack.c.h.b16 %v618
        %v997 = vunpack.c.l.b16 %v619
        %v998 = vunpack.c.h.b16 %v619
        %v999 = vunpack.c.l.b16 %v620
        %v1000 = vunpack.c.h.b16 %v620
        %v1001 = vunpack.c.l.b16 %v621
        %v1002 = vunpack.c.h.b16 %v621
        %v1003 = vunpack.c.l.b16 %v622
        %v1004 = vunpack.c.h.b16 %v622
        %v1005 = vunpack.c.l.b16 %v623
        %v1006 = vunpack.c.h.b16 %v623
        %v1007 = vunpack.c.l.b16 %v624
        %v1008 = vunpack.c.h.b16 %v624
        %v1009 = vunpack.c.l.b16 %v625
        %v1010 = vunpack.c.h.b16 %v625
        %v1011 = vunpack.c.l.b16 %v626
        %v1012 = vunpack.c.h.b16 %v626
        %v1013 = vunpack.c.l.b16 %v627
        %v1014 = vunpack.c.h.b16 %v627
        %v1015 = vunpack.c.l.b16 %v628
        %v1016 = vunpack.c.h.b16 %v628
        %v1017 = vunpack.c.l.b16 %v629
        %v1018 = vunpack.c.h.b16 %v629
        %v1019 = vunpack.c.l.b16 %v630
        %v1020 = vunpack.c.h.b16 %v630
        %v1021 = vunpack.c.l.b16 %v631
        %v1022 = vunpack.c.h.b16 %v631
        %v1023 = vunpack.c.l.b16 %v632
        %v1024 = vunpack.c.h.b16 %v632
        %v1025 = vunpack.c.l.b16 %v633
        %v1026 = vunpack.c.h.b16 %v633
        %v1027 = vunpack.c.l.b16 %v634
        %v1028 = vunpack.c.h.b16 %v634
        %v1029 = vunpack.c.l.b16 %v635
        %v1030 = vunpack.c.h.b16 %v635
        %v1031 = vunpack.c.l.b16 %v636
        %v1032 = vunpack.c.h.b16 %v636
        %v1033 = vpack.c.b16 %v779, %v777
        %v1034 = vpack.c.b16 %v780, %v778
        %v1035 = vpack.c.b16 %v783, %v781
        %v1036 = vpack.c.b16 %v784, %v782
        %v1037 = vpack.c.b16 %v787, %v785
        %v1038 = vpack.c.b16 %v788, %v786
        %v1039 = vpack.c.b16 %v791, %v789
        %v1040 = vpack.c.b16 %v792, %v790
        %v1041 = vpack.c.b16 %v795, %v793
        %v1042 = vpack.c.b16 %v796, %v794
        %v1043 = vpack.c.b16 %v799, %v797
        %v1044 = vpack.c.b16 %v800, %v798
        %v1045 = vpack.c.b16 %v803, %v801
        %v1046 = vpack.c.b16 %v804, %v802
        %v1047 = vpack.c.b16 %v807, %v805
        %v1048 = vpack.c.b16 %v808, %v806
        %v1049 = vpack.c.b16 %v811, %v809
        %v1050 = vpack.c.b16 %v812, %v810
        %v1051 = vpack.c.b16 %v815, %v813
        %v1052 = vpack.c.b16 %v816, %v814
        %v1053 = vpack.c.b16 %v819, %v817
        %v1054 = vpack.c.b16 %v820, %v818
        %v1055 = vpack.c.b16 %v823, %v821
        %v1056 = vpack.c.b16 %v824, %v822
        %v1057 = vpack.c.b16 %v827, %v825
        %v1058 = vpack.c.b16 %v828, %v826
        %v1059 = vpack.c.b16 %v831, %v829
        %v1060 = vpack.c.b16 %v832, %v830
        %v1061 = vpack.c.b16 %v835, %v833
        %v1062 = vpack.c.b16 %v836, %v834
        %v1063 = vpack.c.b16 %v839, %v837
        %v1064 = vpack.c.b16 %v840, %v838
        %v1065 = vpack.c.b16 %v843, %v841
        %v1066 = vpack.c.b16 %v844, %v842
        %v1067 = vpack.c.b16 %v847, %v845
        %v1068 = vpack.c.b16 %v848, %v846
        %v1069 = vpack.c.b16 %v851, %v849
        %v1070 = vpack.c.b16 %v852, %v850
        %v1071 = vpack.c.b16 %v855, %v853
        %v1072 = vpack.c.b16 %v856, %v854
        %v1073 = vpack.c.b16 %v859, %v857
        %v1074 = vpack.c.b16 %v860, %v858
        %v1075 = vpack.c.b16 %v863, %v861
        %v1076 = vpack.c.b16 %v864, %v862
        %v1077 = vpack.c.b16 %v867, %v865
        %v1078 = vpack.c.b16 %v868, %v866
        %v1079 = vpack.c.b16 %v871, %v869
        %v1080 = vpack.c.b16 %v872, %v870
        %v1081 = vpack.c.b16 %v875, %v873
        %v1082 = vpack.c.b16 %v876, %v874
        %v1083 = vpack.c.b16 %v879, %v877
        %v1084 = vpack.c.b16 %v880, %v878
        %v1085 = vpack.c.b16 %v883, %v881
        %v1086 = vpack.c.b16 %v884, %v882
        %v1087 = vpack.c.b16 %v887, %v885
        %v1088 = vpack.c.b16 %v888, %v886
        %v1089 = vpack.c.b16 %v891, %v889
        %v1090 = vpack.c.b16 %v892, %v890
        %v1091 = vpack.c.b16 %v895, %v893
        %v1092 = vpack.c.b16 %v896, %v894
        %v1093 = vpack.c.b16 %v899, %v897
        %v1094 = vpack.c.b16 %v900, %v898
        %v1095 = vpack.c.b16 %v903, %v901
        %v1096 = vpack.c.b16 %v904, %v902
        %v1097 = vpack.c.b16 %v907, %v905
        %v1098 = vpack.c.b16 %v908, %v906
        %v1099 = vpack.c.b16 %v911, %v909
        %v1100 = vpack.c.b16 %v912, %v910
        %v1101 = vpack.c.b16 %v915, %v913
        %v1102 = vpack.c.b16 %v916, %v914
        %v1103 = vpack.c.b16 %v919, %v917
        %v1104 = vpack.c.b16 %v920, %v918
        %v1105 = vpack.c.b16 %v923, %v921
        %v1106 = vpack.c.b16 %v924, %v922
        %v1107 = vpack.c.b16 %v927, %v925
        %v1108 = vpack.c.b16 %v928, %v926
        %v1109 = vpack.c.b16 %v931, %v929
        %v1110 = vpack.c.b16 %v932, %v930
        %v1111 = vpack.c.b16 %v935, %v933
        %v1112 = vpack.c.b16 %v936, %v934
        %v1113 = vpack.c.b16 %v939, %v937
        %v1114 = vpack.c.b16 %v940, %v938
        %v1115 = vpack.c.b16 %v943, %v941
        %v1116 = vpack.c.b16 %v944, %v942
        %v1117 = vpack.c.b16 %v947, %v945
        %v1118 = vpack.c.b16 %v948, %v946
        %v1119 = vpack.c.b16 %v951, %v949
        %v1120 = vpack.c.b16 %v952, %v950
        %v1121 = vpack.c.b16 %v955, %v953
        %v1122 = vpack.c.b16 %v956, %v954
        %v1123 = vpack.c.b16 %v959, %v957
        %v1124 = vpack.c.b16 %v960, %v958
        %v1125 = vpack.c.b16 %v963, %v961
        %v1126 = vpack.c.b16 %v964, %v962
        %v1127 = vpack.c.b16 %v967, %v965
        %v1128 = vpack.c.b16 %v968, %v966
        %v1129 = vpack.c.b16 %v971, %v969
        %v1130 = vpack.c.b16 %v972, %v970
        %v1131 = vpack.c.b16 %v975, %v973
        %v1132 = vpack.c.b16 %v976, %v974
        %v1133 = vpack.c.b16 %v979, %v977
        %v1134 = vpack.c.b16 %v980, %v978
        %v1135 = vpack.c.b16 %v983, %v981
        %v1136 = vpack.c.b16 %v984, %v982
        %v1137 = vpack.c.b16 %v987, %v985
        %v1138 = vpack.c.b16 %v988, %v986
        %v1139 = vpack.c.b16 %v991, %v989
        %v1140 = vpack.c.b16 %v992, %v990
        %v1141 = vpack.c.b16 %v995, %v993
        %v1142 = vpack.c.b16 %v996, %v994
        %v1143 = vpack.c.b16 %v999, %v997
        %v1144 = vpack.c.b16 %v1000, %v998
        %v1145 = vpack.c.b16 %v1003, %v1001
        %v1146 = vpack.c.b16 %v1004, %v1002
        %v1147 = vpack.c.b16 %v1007, %v1005
        %v1148 = vpack.c.b16 %v1008, %v1006
        %v1149 = vpack.c.b16 %v1011, %v1009
        %v1150 = vpack.c.b16 %v1012, %v1010
        %v1151 = vpack.c.b16 %v1015, %v1013
        %v1152 = vpack.c.b16 %v1016, %v1014
        %v1153 = vpack.c.b16 %v1019, %v1017
        %v1154 = vpack.c.b16 %v1020, %v1018
        %v1155 = vpack.c.b16 %v1023, %v1021
        %v1156 = vpack.c.b16 %v1024, %v1022
        %v1157 = vpack.c.b16 %v1027, %v1025
        %v1158 = vpack.c.b16 %v1028, %v1026
        %v1159 = vpack.c.b16 %v1031, %v1029
        %v1160 = vpack.c.b16 %v1032, %v1030
        %1289 = vmatprep.subr.bf16.mxu0 %v1048
        %1290 = vmatpush1.bf16.msra.mxu0 %v1047
        %1291 = vmatprep.subr.bf16.mxu0 %v1046
        %1292 = vmatpush1.bf16.msra.mxu0 %v1045
        %1293 = vmatprep.subr.bf16.mxu0 %v1044
        %1294 = vmatpush1.bf16.msra.mxu0 %v1043
        %1295 = vmatprep.subr.bf16.mxu0 %v1042
        %1296 = vmatpush1.bf16.msra.mxu0 %v1041
        %1297 = vmatprep.subr.bf16.mxu0 %v1040
        %1298 = vmatpush1.bf16.msra.mxu0 %v1039
        %1299 = vmatprep.subr.bf16.mxu0 %v1038
        %1300 = vmatpush1.bf16.msra.mxu0 %v1037
        %1301 = vmatprep.subr.bf16.mxu0 %v1036
        %1302 = vmatpush1.bf16.msra.mxu0 %v1035
        %1303 = vmatprep.subr.bf16.mxu0 %v1034
        %1304 = vmatpush1.bf16.msra.mxu0 %v1033
        %1305 = vmatprep.subr.bf16.mxu0 %v1064
        %1306 = vmatpush2.bf16.msra.mxu0 %v1063
        %1307 = vmatprep.subr.bf16.mxu0 %v1062
        %1308 = vmatpush2.bf16.msra.mxu0 %v1061
        %1309 = vmatprep.subr.bf16.mxu0 %v1060
        %1310 = vmatpush2.bf16.msra.mxu0 %v1059
        %1311 = vmatprep.subr.bf16.mxu0 %v1058
        %1312 = vmatpush2.bf16.msra.mxu0 %v1057
        %1313 = vmatprep.subr.bf16.mxu0 %v1056
        %1314 = vmatpush2.bf16.msra.mxu0 %v1055
        %1315 = vmatprep.subr.bf16.mxu0 %v1054
        %1316 = vmatpush2.bf16.msra.mxu0 %v1053
        %1317 = vmatprep.subr.bf16.mxu0 %v1052
        %1318 = vmatpush2.bf16.msra.mxu0 %v1051
        %1319 = vmatprep.subr.bf16.mxu0 %v1050
        %1320 = vmatpush2.bf16.msra.mxu0 %v1049
        %1321 = vmatprep.mubr.bf16.mxu0 %v478
        %1322 = vmatmul.mubr.bf16.gmra.mxu0 %v477
        %v1323 = vpop.f32.mrf.mxu0
        %v1324 = vadd.f32 %v642, %v1323
        %v1325 = vpop.f32.mrf.mxu0
        %v1326 = vadd.f32 %v646, %v1325
        %v1327 = vpop.f32.mrf.mxu0
        %v1328 = vadd.f32 %v642, %v1327
        %v1329 = vpop.f32.mrf.mxu0
        %v1330 = vadd.f32 %v646, %v1329
        %1331 = vmatprep.mubr.bf16.mxu0 %v486
        %1332 = vmatmul.mubr.bf16.gmra.mxu0 %v485
        %v1333 = vpop.f32.mrf.mxu0
        %v1334 = vadd.f32 %v642, %v1333
        %v1335 = vpop.f32.mrf.mxu0
        %v1336 = vadd.f32 %v646, %v1335
        %v1337 = vpop.f32.mrf.mxu0
        %v1338 = vadd.f32 %v642, %v1337
        %v1339 = vpop.f32.mrf.mxu0
        %v1340 = vadd.f32 %v646, %v1339
        %1341 = vmatprep.mubr.bf16.mxu0 %v494
        %1342 = vmatmul.mubr.bf16.gmra.mxu0 %v493
        %v1343 = vpop.f32.mrf.mxu0
        %v1344 = vadd.f32 %v642, %v1343
        %v1345 = vpop.f32.mrf.mxu0
        %v1346 = vadd.f32 %v646, %v1345
        %v1347 = vpop.f32.mrf.mxu0
        %v1348 = vadd.f32 %v642, %v1347
        %v1349 = vpop.f32.mrf.mxu0
        %v1350 = vadd.f32 %v646, %v1349
        %1351 = vmatprep.mubr.bf16.mxu0 %v502
        %1352 = vmatmul.mubr.bf16.gmra.mxu0 %v501
        %v1353 = vpop.f32.mrf.mxu0
        %v1354 = vadd.f32 %v642, %v1353
        %v1355 = vpop.f32.mrf.mxu0
        %v1356 = vadd.f32 %v646, %v1355
        %v1357 = vpop.f32.mrf.mxu0
        %v1358 = vadd.f32 %v642, %v1357
        %v1359 = vpop.f32.mrf.mxu0
        %v1360 = vadd.f32 %v646, %v1359
        %1361 = vdwg.mxu0
        %1362 = vmatprep.subr.bf16.mxu0 %v1080
        %1363 = vmatpush1.bf16.msra.mxu0 %v1079
        %1364 = vmatprep.subr.bf16.mxu0 %v1078
        %1365 = vmatpush1.bf16.msra.mxu0 %v1077
        %1366 = vmatprep.subr.bf16.mxu0 %v1076
        %1367 = vmatpush1.bf16.msra.mxu0 %v1075
        %1368 = vmatprep.subr.bf16.mxu0 %v1074
        %1369 = vmatpush1.bf16.msra.mxu0 %v1073
        %1370 = vmatprep.subr.bf16.mxu0 %v1072
        %1371 = vmatpush1.bf16.msra.mxu0 %v1071
        %1372 = vmatprep.subr.bf16.mxu0 %v1070
        %1373 = vmatpush1.bf16.msra.mxu0 %v1069
        %1374 = vmatprep.subr.bf16.mxu0 %v1068
        %1375 = vmatpush1.bf16.msra.mxu0 %v1067
        %1376 = vmatprep.subr.bf16.mxu0 %v1066
        %1377 = vmatpush1.bf16.msra.mxu0 %v1065
        %1378 = vmatprep.subr.bf16.mxu0 %v1096
        %1379 = vmatpush2.bf16.msra.mxu0 %v1095
        %1380 = vmatprep.subr.bf16.mxu0 %v1094
        %1381 = vmatpush2.bf16.msra.mxu0 %v1093
        %1382 = vmatprep.subr.bf16.mxu0 %v1092
        %1383 = vmatpush2.bf16.msra.mxu0 %v1091
        %1384 = vmatprep.subr.bf16.mxu0 %v1090
        %1385 = vmatpush2.bf16.msra.mxu0 %v1089
        %1386 = vmatprep.subr.bf16.mxu0 %v1088
        %1387 = vmatpush2.bf16.msra.mxu0 %v1087
        %1388 = vmatprep.subr.bf16.mxu0 %v1086
        %1389 = vmatpush2.bf16.msra.mxu0 %v1085
        %1390 = vmatprep.subr.bf16.mxu0 %v1084
        %1391 = vmatpush2.bf16.msra.mxu0 %v1083
        %1392 = vmatprep.subr.bf16.mxu0 %v1082
        %1393 = vmatpush2.bf16.msra.mxu0 %v1081
        %1394 = vmatprep.mubr.bf16.mxu0 %v480
        %1395 = vmatmul.mubr.bf16.gmra.mxu0 %v479
        %v1396 = vpop.f32.mrf.mxu0
        %v1397 = vadd.f32 %v1324, %v1396
        %v1398 = vpop.f32.mrf.mxu0
        %v1399 = vadd.f32 %v1326, %v1398
        %v1400 = vpop.f32.mrf.mxu0
        %v1401 = vadd.f32 %v1328, %v1400
        %v1402 = vpop.f32.mrf.mxu0
        %v1403 = vadd.f32 %v1330, %v1402
        %1404 = vmatprep.mubr.bf16.mxu0 %v488
        %1405 = vmatmul.mubr.bf16.gmra.mxu0 %v487
        %v1406 = vpop.f32.mrf.mxu0
        %v1407 = vadd.f32 %v1334, %v1406
        %v1408 = vpop.f32.mrf.mxu0
        %v1409 = vadd.f32 %v1336, %v1408
        %v1410 = vpop.f32.mrf.mxu0
        %v1411 = vadd.f32 %v1338, %v1410
        %v1412 = vpop.f32.mrf.mxu0
        %v1413 = vadd.f32 %v1340, %v1412
        %1414 = vmatprep.mubr.bf16.mxu0 %v496
        %1415 = vmatmul.mubr.bf16.gmra.mxu0 %v495
        %v1416 = vpop.f32.mrf.mxu0
        %v1417 = vadd.f32 %v1344, %v1416
        %v1418 = vpop.f32.mrf.mxu0
        %v1419 = vadd.f32 %v1346, %v1418
        %v1420 = vpop.f32.mrf.mxu0
        %v1421 = vadd.f32 %v1348, %v1420
        %v1422 = vpop.f32.mrf.mxu0
        %v1423 = vadd.f32 %v1350, %v1422
        %1424 = vmatprep.mubr.bf16.mxu0 %v504
        %1425 = vmatmul.mubr.bf16.gmra.mxu0 %v503
        %v1426 = vpop.f32.mrf.mxu0
        %v1427 = vadd.f32 %v1354, %v1426
        %v1428 = vpop.f32.mrf.mxu0
        %v1429 = vadd.f32 %v1356, %v1428
        %v1430 = vpop.f32.mrf.mxu0
        %v1431 = vadd.f32 %v1358, %v1430
        %v1432 = vpop.f32.mrf.mxu0
        %v1433 = vadd.f32 %v1360, %v1432
        %1434 = vdwg.mxu0
        %1435 = vmatprep.subr.bf16.mxu0 %v1112
        %1436 = vmatpush1.bf16.msra.mxu0 %v1111
        %1437 = vmatprep.subr.bf16.mxu0 %v1110
        %1438 = vmatpush1.bf16.msra.mxu0 %v1109
        %1439 = vmatprep.subr.bf16.mxu0 %v1108
        %1440 = vmatpush1.bf16.msra.mxu0 %v1107
        %1441 = vmatprep.subr.bf16.mxu0 %v1106
        %1442 = vmatpush1.bf16.msra.mxu0 %v1105
        %1443 = vmatprep.subr.bf16.mxu0 %v1104
        %1444 = vmatpush1.bf16.msra.mxu0 %v1103
        %1445 = vmatprep.subr.bf16.mxu0 %v1102
        %1446 = vmatpush1.bf16.msra.mxu0 %v1101
        %1447 = vmatprep.subr.bf16.mxu0 %v1100
        %1448 = vmatpush1.bf16.msra.mxu0 %v1099
        %1449 = vmatprep.subr.bf16.mxu0 %v1098
        %1450 = vmatpush1.bf16.msra.mxu0 %v1097
        %1451 = vmatprep.subr.bf16.mxu0 %v1128
        %1452 = vmatpush2.bf16.msra.mxu0 %v1127
        %1453 = vmatprep.subr.bf16.mxu0 %v1126
        %1454 = vmatpush2.bf16.msra.mxu0 %v1125
        %1455 = vmatprep.subr.bf16.mxu0 %v1124
        %1456 = vmatpush2.bf16.msra.mxu0 %v1123
        %1457 = vmatprep.subr.bf16.mxu0 %v1122
        %1458 = vmatpush2.bf16.msra.mxu0 %v1121
        %1459 = vmatprep.subr.bf16.mxu0 %v1120
        %1460 = vmatpush2.bf16.msra.mxu0 %v1119
        %1461 = vmatprep.subr.bf16.mxu0 %v1118
        %1462 = vmatpush2.bf16.msra.mxu0 %v1117
        %1463 = vmatprep.subr.bf16.mxu0 %v1116
        %1464 = vmatpush2.bf16.msra.mxu0 %v1115
        %1465 = vmatprep.subr.bf16.mxu0 %v1114
        %1466 = vmatpush2.bf16.msra.mxu0 %v1113
        %1467 = vmatprep.mubr.bf16.mxu0 %v482
        %1468 = vmatmul.mubr.bf16.gmra.mxu0 %v481
        %v1469 = vpop.f32.mrf.mxu0
        %v1470 = vadd.f32 %v1397, %v1469
        %v1471 = vpop.f32.mrf.mxu0
        %v1472 = vadd.f32 %v1399, %v1471
        %v1473 = vpop.f32.mrf.mxu0
        %v1474 = vadd.f32 %v1401, %v1473
        %v1475 = vpop.f32.mrf.mxu0
        %v1476 = vadd.f32 %v1403, %v1475
        %1477 = vmatprep.mubr.bf16.mxu0 %v490
        %1478 = vmatmul.mubr.bf16.gmra.mxu0 %v489
        %v1479 = vpop.f32.mrf.mxu0
        %v1480 = vadd.f32 %v1407, %v1479
        %v1481 = vpop.f32.mrf.mxu0
        %v1482 = vadd.f32 %v1409, %v1481
        %v1483 = vpop.f32.mrf.mxu0
        %v1484 = vadd.f32 %v1411, %v1483
        %v1485 = vpop.f32.mrf.mxu0
        %v1486 = vadd.f32 %v1413, %v1485
        %1487 = vmatprep.mubr.bf16.mxu0 %v498
        %1488 = vmatmul.mubr.bf16.gmra.mxu0 %v497
        %v1489 = vpop.f32.mrf.mxu0
        %v1490 = vadd.f32 %v1417, %v1489
        %v1491 = vpop.f32.mrf.mxu0
        %v1492 = vadd.f32 %v1419, %v1491
        %v1493 = vpop.f32.mrf.mxu0
        %v1494 = vadd.f32 %v1421, %v1493
        %v1495 = vpop.f32.mrf.mxu0
        %v1496 = vadd.f32 %v1423, %v1495
        %1497 = vmatprep.mubr.bf16.mxu0 %v506
        %1498 = vmatmul.mubr.bf16.gmra.mxu0 %v505
        %v1499 = vpop.f32.mrf.mxu0
        %v1500 = vadd.f32 %v1427, %v1499
        %v1501 = vpop.f32.mrf.mxu0
        %v1502 = vadd.f32 %v1429, %v1501
        %v1503 = vpop.f32.mrf.mxu0
        %v1504 = vadd.f32 %v1431, %v1503
        %v1505 = vpop.f32.mrf.mxu0
        %v1506 = vadd.f32 %v1433, %v1505
        %1507 = vdwg.mxu0
        %1508 = vmatprep.subr.bf16.mxu0 %v1144
        %1509 = vmatpush1.bf16.msra.mxu0 %v1143
        %1510 = vmatprep.subr.bf16.mxu0 %v1142
        %1511 = vmatpush1.bf16.msra.mxu0 %v1141
        %1512 = vmatprep.subr.bf16.mxu0 %v1140
        %1513 = vmatpush1.bf16.msra.mxu0 %v1139
        %1514 = vmatprep.subr.bf16.mxu0 %v1138
        %1515 = vmatpush1.bf16.msra.mxu0 %v1137
        %1516 = vmatprep.subr.bf16.mxu0 %v1136
        %1517 = vmatpush1.bf16.msra.mxu0 %v1135
        %1518 = vmatprep.subr.bf16.mxu0 %v1134
        %1519 = vmatpush1.bf16.msra.mxu0 %v1133
        %1520 = vmatprep.subr.bf16.mxu0 %v1132
        %1521 = vmatpush1.bf16.msra.mxu0 %v1131
        %1522 = vmatprep.subr.bf16.mxu0 %v1130
        %1523 = vmatpush1.bf16.msra.mxu0 %v1129
        %1524 = vmatprep.subr.bf16.mxu0 %v1160
        %1525 = vmatpush2.bf16.msra.mxu0 %v1159
        %1526 = vmatprep.subr.bf16.mxu0 %v1158
        %1527 = vmatpush2.bf16.msra.mxu0 %v1157
        %1528 = vmatprep.subr.bf16.mxu0 %v1156
        %1529 = vmatpush2.bf16.msra.mxu0 %v1155
        %1530 = vmatprep.subr.bf16.mxu0 %v1154
        %1531 = vmatpush2.bf16.msra.mxu0 %v1153
        %1532 = vmatprep.subr.bf16.mxu0 %v1152
        %1533 = vmatpush2.bf16.msra.mxu0 %v1151
        %1534 = vmatprep.subr.bf16.mxu0 %v1150
        %1535 = vmatpush2.bf16.msra.mxu0 %v1149
        %1536 = vmatprep.subr.bf16.mxu0 %v1148
        %1537 = vmatpush2.bf16.msra.mxu0 %v1147
        %1538 = vmatprep.subr.bf16.mxu0 %v1146
        %1539 = vmatpush2.bf16.msra.mxu0 %v1145
        %1540 = vmatprep.mubr.bf16.mxu0 %v484
        %1541 = vmatmul.mubr.bf16.gmra.mxu0 %v483
        %v1542 = vpop.f32.mrf.mxu0
        %v1543 = vadd.f32 %v1470, %v1542
        %v1544 = vpop.f32.mrf.mxu0
        %v1545 = vadd.f32 %v1472, %v1544
        %v1546 = vpop.f32.mrf.mxu0
        %v1547 = vadd.f32 %v1474, %v1546
        %v1548 = vpop.f32.mrf.mxu0
        %v1549 = vadd.f32 %v1476, %v1548
        %1550 = vmatprep.mubr.bf16.mxu0 %v492
        %1551 = vmatmul.mubr.bf16.gmra.mxu0 %v491
        %v1552 = vpop.f32.mrf.mxu0
        %v1553 = vadd.f32 %v1480, %v1552
        %v1554 = vpop.f32.mrf.mxu0
        %v1555 = vadd.f32 %v1482, %v1554
        %v1556 = vpop.f32.mrf.mxu0
        %v1557 = vadd.f32 %v1484, %v1556
        %v1558 = vpop.f32.mrf.mxu0
        %v1559 = vadd.f32 %v1486, %v1558
        %1560 = vmatprep.mubr.bf16.mxu0 %v500
        %1561 = vmatmul.mubr.bf16.gmra.mxu0 %v499
        %v1562 = vpop.f32.mrf.mxu0
        %v1563 = vadd.f32 %v1490, %v1562
        %v1564 = vpop.f32.mrf.mxu0
        %v1565 = vadd.f32 %v1492, %v1564
        %v1566 = vpop.f32.mrf.mxu0
        %v1567 = vadd.f32 %v1494, %v1566
        %v1568 = vpop.f32.mrf.mxu0
        %v1569 = vadd.f32 %v1496, %v1568
        %1570 = vmatprep.mubr.bf16.mxu0 %v508
        %1571 = vmatmul.mubr.bf16.gmra.mxu0 %v507
        %v1572 = vpop.f32.mrf.mxu0
        %v1573 = vadd.f32 %v1500, %v1572
        %v1574 = vpop.f32.mrf.mxu0
        %v1575 = vadd.f32 %v1502, %v1574
        %v1576 = vpop.f32.mrf.mxu0
        %v1577 = vadd.f32 %v1504, %v1576
        %v1578 = vpop.f32.mrf.mxu0
        %v1579 = vadd.f32 %v1506, %v1578
        %1580 = vdwg.mxu0
        %v1581 = vmax.f32 %v1543, 0.0
        %v1582 = vmax.f32 %v1545, 0.0
        %v1583 = vmax.f32 %v1547, 0.0
        %v1584 = vmax.f32 %v1549, 0.0
        %v1585 = vmax.f32 %v1553, 0.0
        %v1586 = vmax.f32 %v1555, 0.0
        %v1587 = vmax.f32 %v1557, 0.0
        %v1588 = vmax.f32 %v1559, 0.0
        %v1589 = vmax.f32 %v1563, 0.0
        %v1590 = vmax.f32 %v1565, 0.0
        %v1591 = vmax.f32 %v1567, 0.0
        %v1592 = vmax.f32 %v1569, 0.0
        %v1593 = vmax.f32 %v1573, 0.0
        %v1594 = vmax.f32 %v1575, 0.0
        %v1595 = vmax.f32 %v1577, 0.0
        %v1596 = vmax.f32 %v1579, 0.0
        %v1597 = vpack.c.bf16 %v1583, %v1581
        %v1598 = vpack.c.bf16 %v1584, %v1582
        %v1599 = vpack.c.bf16 %v1587, %v1585
        %v1600 = vpack.c.bf16 %v1588, %v1586
        %v1601 = vpack.c.bf16 %v1591, %v1589
        %v1602 = vpack.c.bf16 %v1592, %v1590
        %v1603 = vpack.c.bf16 %v1595, %v1593
        %v1604 = vpack.c.bf16 %v1596, %v1594
        %v1605 = vld [vmem:[#allocation7] sm:$0xf]
        %v1606 = vld [vmem:[#allocation7 + $0x4] sm:$0xf]
        %v1607 = vld [vmem:[#allocation7 + $0x8] sm:$0xf]
        %v1608 = vld [vmem:[#allocation7 + $0xc] sm:$0xf]
        %v1609 = vld [vmem:[#allocation7 + $0x10] sm:$0xf]
        %v1610 = vld [vmem:[#allocation7 + $0x14] sm:$0xf]
        %v1611 = vld [vmem:[#allocation7 + $0x18] sm:$0xf]
        %v1612 = vld [vmem:[#allocation7 + $0x1c] sm:$0xf]
        %v1613 = vld [vmem:[#allocation7 + $0x20] sm:$0xf]
        %v1614 = vld [vmem:[#allocation7 + $0x24] sm:$0xf]
        %v1615 = vld [vmem:[#allocation7 + $0x28] sm:$0xf]
        %v1616 = vld [vmem:[#allocation7 + $0x2c] sm:$0xf]
        %v1617 = vld [vmem:[#allocation7 + $0x30] sm:$0xf]
        %v1618 = vld [vmem:[#allocation7 + $0x34] sm:$0xf]
        %v1619 = vld [vmem:[#allocation7 + $0x38] sm:$0xf]
        %v1620 = vld [vmem:[#allocation7 + $0x3c] sm:$0xf]
        %v1621 = vld [vmem:[#allocation7 + $0x40] sm:$0xf]
        %v1622 = vld [vmem:[#allocation7 + $0x44] sm:$0xf]
        %v1623 = vld [vmem:[#allocation7 + $0x48] sm:$0xf]
        %v1624 = vld [vmem:[#allocation7 + $0x4c] sm:$0xf]
        %v1625 = vld [vmem:[#allocation7 + $0x50] sm:$0xf]
        %v1626 = vld [vmem:[#allocation7 + $0x54] sm:$0xf]
        %v1627 = vld [vmem:[#allocation7 + $0x58] sm:$0xf]
        %v1628 = vld [vmem:[#allocation7 + $0x5c] sm:$0xf]
        %v1629 = vld [vmem:[#allocation7 + $0x60] sm:$0xf]
        %v1630 = vld [vmem:[#allocation7 + $0x64] sm:$0xf]
        %v1631 = vld [vmem:[#allocation7 + $0x68] sm:$0xf]
        %v1632 = vld [vmem:[#allocation7 + $0x6c] sm:$0xf]
        %v1633 = vld [vmem:[#allocation7 + $0x70] sm:$0xf]
        %v1634 = vld [vmem:[#allocation7 + $0x74] sm:$0xf]
        %v1635 = vld [vmem:[#allocation7 + $0x78] sm:$0xf]
        %v1636 = vld [vmem:[#allocation7 + $0x7c] sm:$0xf]
        %v1637 = vld [vmem:[%s4] sm:$0x1]
        %v1639 = vlaneseq
        %v1640 = vshrl.u32 %v1639, 7
        %v1641 = vsub.s32 0, %v1640
        %v1642 = vrot.slane %v1637, %v1641
        %v1676 = vunpack.c.l.b16 %v1605
        %v1677 = vunpack.c.l.b16 %v1606
        %v1678 = vunpack.c.l.b16 %v1607
        %v1679 = vunpack.c.l.b16 %v1608
        %v1680 = vunpack.c.l.b16 %v1609
        %v1681 = vunpack.c.l.b16 %v1610
        %v1682 = vunpack.c.l.b16 %v1611
        %v1683 = vunpack.c.l.b16 %v1612
        %v1684 = vunpack.c.l.b16 %v1613
        %v1685 = vunpack.c.l.b16 %v1614
        %v1686 = vunpack.c.l.b16 %v1615
        %v1687 = vunpack.c.l.b16 %v1616
        %v1688 = vunpack.c.l.b16 %v1617
        %v1689 = vunpack.c.l.b16 %v1618
        %v1690 = vunpack.c.l.b16 %v1619
        %v1691 = vunpack.c.l.b16 %v1620
        %v1692 = vunpack.c.l.b16 %v1621
        %v1693 = vunpack.c.l.b16 %v1622
        %v1694 = vunpack.c.l.b16 %v1623
        %v1695 = vunpack.c.l.b16 %v1624
        %v1696 = vunpack.c.l.b16 %v1625
        %v1697 = vunpack.c.l.b16 %v1626
        %v1698 = vunpack.c.l.b16 %v1627
        %v1699 = vunpack.c.l.b16 %v1628
        %v1700 = vunpack.c.l.b16 %v1629
        %v1701 = vunpack.c.l.b16 %v1630
        %v1702 = vunpack.c.l.b16 %v1631
        %v1703 = vunpack.c.l.b16 %v1632
        %v1704 = vunpack.c.l.b16 %v1633
        %v1705 = vunpack.c.l.b16 %v1634
        %v1706 = vunpack.c.l.b16 %v1635
        %v1707 = vunpack.c.l.b16 %v1636
        %v1708 = vpack.c.b16 %v1677, %v1676
        %v1709 = vpack.c.b16 %v1679, %v1678
        %v1710 = vpack.c.b16 %v1681, %v1680
        %v1711 = vpack.c.b16 %v1683, %v1682
        %v1712 = vpack.c.b16 %v1685, %v1684
        %v1713 = vpack.c.b16 %v1687, %v1686
        %v1714 = vpack.c.b16 %v1689, %v1688
        %v1715 = vpack.c.b16 %v1691, %v1690
        %v1716 = vpack.c.b16 %v1693, %v1692
        %v1717 = vpack.c.b16 %v1695, %v1694
        %v1718 = vpack.c.b16 %v1697, %v1696
        %v1719 = vpack.c.b16 %v1699, %v1698
        %v1720 = vpack.c.b16 %v1701, %v1700
        %v1721 = vpack.c.b16 %v1703, %v1702
        %v1722 = vpack.c.b16 %v1705, %v1704
        %v1723 = vpack.c.b16 %v1707, %v1706
        %1740 = vmatprep.subr.bf16.mxu0 0
        %1741 = vmatpush1.bf16.msra.mxu0 %v1715
        %1742 = vmatprep.subr.bf16.mxu0 0
        %1743 = vmatpush1.bf16.msra.mxu0 %v1714
        %1744 = vmatprep.subr.bf16.mxu0 0
        %1745 = vmatpush1.bf16.msra.mxu0 %v1713
        %1746 = vmatprep.subr.bf16.mxu0 0
        %1747 = vmatpush1.bf16.msra.mxu0 %v1712
        %1748 = vmatprep.subr.bf16.mxu0 0
        %1749 = vmatpush1.bf16.msra.mxu0 %v1711
        %1750 = vmatprep.subr.bf16.mxu0 0
        %1751 = vmatpush1.bf16.msra.mxu0 %v1710
        %1752 = vmatprep.subr.bf16.mxu0 0
        %1753 = vmatpush1.bf16.msra.mxu0 %v1709
        %1754 = vmatprep.subr.bf16.mxu0 0
        %1755 = vmatpush1.bf16.msra.mxu0 %v1708
        %1756 = vmatprep.subr.bf16.mxu0 0
        %1757 = vmatpush2.bf16.msra.mxu0 %v1723
        %1758 = vmatprep.subr.bf16.mxu0 0
        %1759 = vmatpush2.bf16.msra.mxu0 %v1722
        %1760 = vmatprep.subr.bf16.mxu0 0
        %1761 = vmatpush2.bf16.msra.mxu0 %v1721
        %1762 = vmatprep.subr.bf16.mxu0 0
        %1763 = vmatpush2.bf16.msra.mxu0 %v1720
        %1764 = vmatprep.subr.bf16.mxu0 0
        %1765 = vmatpush2.bf16.msra.mxu0 %v1719
        %1766 = vmatprep.subr.bf16.mxu0 0
        %1767 = vmatpush2.bf16.msra.mxu0 %v1718
        %1768 = vmatprep.subr.bf16.mxu0 0
        %1769 = vmatpush2.bf16.msra.mxu0 %v1717
        %1770 = vmatprep.subr.bf16.mxu0 0
        %1771 = vmatpush2.bf16.msra.mxu0 %v1716
        %1772 = vmatprep.mubr.bf16.mxu0 %v1598
        %1773 = vmatmul.mubr.bf16.gmra.mxu0 %v1597
        %v1774 = vpop.f32.mrf.mxu0
        %v1775 = vadd.f32 %v1642, %v1774
        %v1776 = vpop.f32.mrf.mxu0
        %v1777 = vpop.f32.mrf.mxu0
        %v1778 = vadd.f32 %v1642, %v1777
        %v1779 = vpop.f32.mrf.mxu0
        %1780 = vmatprep.mubr.bf16.mxu0 %v1600
        %1781 = vmatmul.mubr.bf16.gmra.mxu0 %v1599
        %v1782 = vpop.f32.mrf.mxu0
        %v1783 = vadd.f32 %v1642, %v1782
        %v1784 = vpop.f32.mrf.mxu0
        %v1785 = vpop.f32.mrf.mxu0
        %v1786 = vadd.f32 %v1642, %v1785
        %v1787 = vpop.f32.mrf.mxu0
        %1788 = vmatprep.mubr.bf16.mxu0 %v1602
        %1789 = vmatmul.mubr.bf16.gmra.mxu0 %v1601
        %v1790 = vpop.f32.mrf.mxu0
        %v1791 = vadd.f32 %v1642, %v1790
        %v1792 = vpop.f32.mrf.mxu0
        %v1793 = vpop.f32.mrf.mxu0
        %v1794 = vadd.f32 %v1642, %v1793
        %v1795 = vpop.f32.mrf.mxu0
        %1796 = vmatprep.mubr.bf16.mxu0 %v1604
        %1797 = vmatmul.mubr.bf16.gmra.mxu0 %v1603
        %v1798 = vpop.f32.mrf.mxu0
        %v1799 = vadd.f32 %v1642, %v1798
        %v1800 = vpop.f32.mrf.mxu0
        %v1801 = vpop.f32.mrf.mxu0
        %v1802 = vadd.f32 %v1642, %v1801
        %v1803 = vpop.f32.mrf.mxu0
        %1804 = vdwg.mxu0
        %v1805 = vmax.f32 %v1775, 0.0
        %v1806 = vmax.f32 %v1778, 0.0
        %v1807 = vmax.f32 %v1783, 0.0
        %v1808 = vmax.f32 %v1786, 0.0
        %v1809 = vmax.f32 %v1791, 0.0
        %v1810 = vmax.f32 %v1794, 0.0
        %v1811 = vmax.f32 %v1799, 0.0
        %v1812 = vmax.f32 %v1802, 0.0
        %v1813 = vpack.c.bf16 %v1806, %v1805
        %v1814 = vpack.c.bf16 %v1808, %v1807
        %v1815 = vpack.c.bf16 %v1810, %v1809
        %v1816 = vpack.c.bf16 %v1812, %v1811
        %v1817 = vld [vmem:[#allocation8] sm:$0xf]
        %v1818 = vld [vmem:[#allocation8 + $0x4] sm:$0xf]
        %v1819 = vld [vmem:[#allocation8 + $0x8] sm:$0xf]
        %v1820 = vld [vmem:[#allocation8 + $0xc] sm:$0xf]
        %v1821 = vld [vmem:[#allocation8 + $0x10] sm:$0xf]
        %v1822 = vld [vmem:[#allocation8 + $0x14] sm:$0xf]
        %v1823 = vld [vmem:[#allocation8 + $0x18] sm:$0xf]
        %v1824 = vld [vmem:[#allocation8 + $0x1c] sm:$0xf]
        %v1825 = vld [vmem:[#allocation8 + $0x20] sm:$0xf]
        %v1826 = vld [vmem:[#allocation8 + $0x24] sm:$0xf]
        %v1827 = vld [vmem:[#allocation8 + $0x28] sm:$0xf]
        %v1828 = vld [vmem:[#allocation8 + $0x2c] sm:$0xf]
        %v1829 = vld [vmem:[#allocation8 + $0x30] sm:$0xf]
        %v1830 = vld [vmem:[#allocation8 + $0x34] sm:$0xf]
        %v1831 = vld [vmem:[#allocation8 + $0x38] sm:$0xf]
        %v1832 = vld [vmem:[#allocation8 + $0x3c] sm:$0xf]
        %v1833 = vld [vmem:[%s6] sm:$0x1]
        %v1835 = vlaneseq
        %v1836 = vshrl.u32 %v1835, 7
        %v1837 = vsub.s32 0, %v1836
        %v1838 = vrot.slane %v1833, %v1837
        %v1856 = vunpack.c.l.b16 %v1817
        %v1857 = vunpack.c.l.b16 %v1818
        %v1858 = vunpack.c.l.b16 %v1819
        %v1859 = vunpack.c.l.b16 %v1820
        %v1860 = vunpack.c.l.b16 %v1821
        %v1861 = vunpack.c.l.b16 %v1822
        %v1862 = vunpack.c.l.b16 %v1823
        %v1863 = vunpack.c.l.b16 %v1824
        %v1864 = vunpack.c.l.b16 %v1825
        %v1865 = vunpack.c.l.b16 %v1826
        %v1866 = vunpack.c.l.b16 %v1827
        %v1867 = vunpack.c.l.b16 %v1828
        %v1868 = vunpack.c.l.b16 %v1829
        %v1869 = vunpack.c.l.b16 %v1830
        %v1870 = vunpack.c.l.b16 %v1831
        %v1871 = vunpack.c.l.b16 %v1832
        %v1872 = vpack.c.b16 %v1857, %v1856
        %v1873 = vpack.c.b16 %v1859, %v1858
        %v1874 = vpack.c.b16 %v1861, %v1860
        %v1875 = vpack.c.b16 %v1863, %v1862
        %v1876 = vpack.c.b16 %v1865, %v1864
        %v1877 = vpack.c.b16 %v1867, %v1866
        %v1878 = vpack.c.b16 %v1869, %v1868
        %v1879 = vpack.c.b16 %v1871, %v1870
        %1888 = vmatprep.subr.bf16.mxu0 0
        %1889 = vmatpush1.bf16.msra.mxu0 %v1879
        %1890 = vmatprep.subr.bf16.mxu0 0
        %1891 = vmatpush1.bf16.msra.mxu0 %v1878
        %1892 = vmatprep.subr.bf16.mxu0 0
        %1893 = vmatpush1.bf16.msra.mxu0 %v1877
        %1894 = vmatprep.subr.bf16.mxu0 0
        %1895 = vmatpush1.bf16.msra.mxu0 %v1876
        %1896 = vmatprep.subr.bf16.mxu0 0
        %1897 = vmatpush1.bf16.msra.mxu0 %v1875
        %1898 = vmatprep.subr.bf16.mxu0 0
        %1899 = vmatpush1.bf16.msra.mxu0 %v1874
        %1900 = vmatprep.subr.bf16.mxu0 0
        %1901 = vmatpush1.bf16.msra.mxu0 %v1873
        %1902 = vmatprep.subr.bf16.mxu0 0
        %1903 = vmatpush1.bf16.msra.mxu0 %v1872
        %1904 = vmatprep.subr.bf16.mxu0 0
        %1905 = vmatpush2.bf16.msra.mxu0 0
        %1906 = vmatprep.subr.bf16.mxu0 0
        %1907 = vmatpush2.bf16.msra.mxu0 0
        %1908 = vmatprep.subr.bf16.mxu0 0
        %1909 = vmatpush2.bf16.msra.mxu0 0
        %1910 = vmatprep.subr.bf16.mxu0 0
        %1911 = vmatpush2.bf16.msra.mxu0 0
        %1912 = vmatprep.subr.bf16.mxu0 0
        %1913 = vmatpush2.bf16.msra.mxu0 0
        %1914 = vmatprep.subr.bf16.mxu0 0
        %1915 = vmatpush2.bf16.msra.mxu0 0
        %1916 = vmatprep.subr.bf16.mxu0 0
        %1917 = vmatpush2.bf16.msra.mxu0 0
        %1918 = vmatprep.subr.bf16.mxu0 0
        %1919 = vmatpush2.bf16.msra.mxu0 0
        %1920 = vmatprep.mubr.bf16.mxu0 0
        %1921 = vmatmul.mubr.bf16.gmra.mxu0 %v1813
        %v1922 = vpop.f32.mrf.mxu0
        %v1923 = vadd.f32 %v1838, %v1922
        %v1924 = vpop.f32.mrf.mxu0
        %v1925 = vpop.f32.mrf.mxu0
        %v1926 = vadd.f32 %v1838, %v1925
        %v1927 = vpop.f32.mrf.mxu0
        %1928 = vmatprep.mubr.bf16.mxu0 0
        %1929 = vmatmul.mubr.bf16.gmra.mxu0 %v1814
        %v1930 = vpop.f32.mrf.mxu0
        %v1931 = vadd.f32 %v1838, %v1930
        %v1932 = vpop.f32.mrf.mxu0
        %v1933 = vpop.f32.mrf.mxu0
        %v1934 = vadd.f32 %v1838, %v1933
        %v1935 = vpop.f32.mrf.mxu0
        %1936 = vmatprep.mubr.bf16.mxu0 0
        %1937 = vmatmul.mubr.bf16.gmra.mxu0 %v1815
        %v1938 = vpop.f32.mrf.mxu0
        %v1939 = vadd.f32 %v1838, %v1938
        %v1940 = vpop.f32.mrf.mxu0
        %v1941 = vpop.f32.mrf.mxu0
        %v1942 = vadd.f32 %v1838, %v1941
        %v1943 = vpop.f32.mrf.mxu0
        %1944 = vmatprep.mubr.bf16.mxu0 0
        %1945 = vmatmul.mubr.bf16.gmra.mxu0 %v1816
        %v1946 = vpop.f32.mrf.mxu0
        %v1947 = vadd.f32 %v1838, %v1946
        %v1948 = vpop.f32.mrf.mxu0
        %v1949 = vpop.f32.mrf.mxu0
        %v1950 = vadd.f32 %v1838, %v1949
        %v1951 = vpop.f32.mrf.mxu0
        %1952 = vdwg.mxu0
        %v1953 = vmax.f32 %v1923, 0.0
        %v1954 = vmax.f32 %v1926, 0.0
        %v1955 = vmax.f32 %v1931, 0.0
        %v1956 = vmax.f32 %v1934, 0.0
        %v1957 = vmax.f32 %v1939, 0.0
        %v1958 = vmax.f32 %v1942, 0.0
        %v1959 = vmax.f32 %v1947, 0.0
        %v1960 = vmax.f32 %v1950, 0.0
        %v1961 = vpack.c.bf16 %v1954, %v1953
        %v1962 = vpack.c.bf16 %v1956, %v1955
        %v1963 = vpack.c.bf16 %v1958, %v1957
        %v1964 = vpack.c.bf16 %v1960, %v1959
        %v1965 = vld [vmem:[#allocation10] sm:$0xf]
        %v1966 = vld [vmem:[#allocation10 + $0x4] sm:$0xf]
        %v1967 = vld [vmem:[#allocation10 + $0x8] sm:$0xf]
        %v1968 = vld [vmem:[#allocation10 + $0xc] sm:$0xf]
        %v1969 = vld [vmem:[#allocation10 + $0x10] sm:$0xf]
        %v1970 = vld [vmem:[#allocation10 + $0x14] sm:$0xf]
        %v1971 = vld [vmem:[#allocation10 + $0x18] sm:$0xf]
        %v1972 = vld [vmem:[#allocation10 + $0x1c] sm:$0xf]
        %v1973 = vld [vmem:[#allocation10 + $0x20] sm:$0xf]
        %v1974 = vld [vmem:[#allocation10 + $0x24] sm:$0xf]
        %v1975 = vld [vmem:[#allocation10 + $0x28] sm:$0xf]
        %v1976 = vld [vmem:[#allocation10 + $0x2c] sm:$0xf]
        %v1977 = vld [vmem:[#allocation10 + $0x30] sm:$0xf]
        %v1978 = vld [vmem:[#allocation10 + $0x34] sm:$0xf]
        %v1979 = vld [vmem:[#allocation10 + $0x38] sm:$0xf]
        %v1980 = vld [vmem:[#allocation10 + $0x3c] sm:$0xf]
        %v1981 = vld [vmem:[%s8] sm:$0x1]
        %v1983 = vlaneseq
        %v1984 = vshrl.u32 %v1983, 7
        %v1985 = vsub.s32 0, %v1984
        %v1986 = vrot.slane %v1981, %v1985
        %v2004 = vunpack.c.l.b16 %v1965
        %v2005 = vunpack.c.l.b16 %v1966
        %v2006 = vunpack.c.l.b16 %v1967
        %v2007 = vunpack.c.l.b16 %v1968
        %v2008 = vunpack.c.l.b16 %v1969
        %v2009 = vunpack.c.l.b16 %v1970
        %v2010 = vunpack.c.l.b16 %v1971
        %v2011 = vunpack.c.l.b16 %v1972
        %v2012 = vunpack.c.l.b16 %v1973
        %v2013 = vunpack.c.l.b16 %v1974
        %v2014 = vunpack.c.l.b16 %v1975
        %v2015 = vunpack.c.l.b16 %v1976
        %v2016 = vunpack.c.l.b16 %v1977
        %v2017 = vunpack.c.l.b16 %v1978
        %v2018 = vunpack.c.l.b16 %v1979
        %v2019 = vunpack.c.l.b16 %v1980
        %v2020 = vpack.c.b16 %v2005, %v2004
        %v2021 = vpack.c.b16 %v2007, %v2006
        %v2022 = vpack.c.b16 %v2009, %v2008
        %v2023 = vpack.c.b16 %v2011, %v2010
        %v2024 = vpack.c.b16 %v2013, %v2012
        %v2025 = vpack.c.b16 %v2015, %v2014
        %v2026 = vpack.c.b16 %v2017, %v2016
        %v2027 = vpack.c.b16 %v2019, %v2018
        %2036 = vmatprep.subr.bf16.mxu0 0
        %2037 = vmatpush1.bf16.msra.mxu0 %v2027
        %2038 = vmatprep.subr.bf16.mxu0 0
        %2039 = vmatpush1.bf16.msra.mxu0 %v2026
        %2040 = vmatprep.subr.bf16.mxu0 0
        %2041 = vmatpush1.bf16.msra.mxu0 %v2025
        %2042 = vmatprep.subr.bf16.mxu0 0
        %2043 = vmatpush1.bf16.msra.mxu0 %v2024
        %2044 = vmatprep.subr.bf16.mxu0 0
        %2045 = vmatpush1.bf16.msra.mxu0 %v2023
        %2046 = vmatprep.subr.bf16.mxu0 0
        %2047 = vmatpush1.bf16.msra.mxu0 %v2022
        %2048 = vmatprep.subr.bf16.mxu0 0
        %2049 = vmatpush1.bf16.msra.mxu0 %v2021
        %2050 = vmatprep.subr.bf16.mxu0 0
        %2051 = vmatpush1.bf16.msra.mxu0 %v2020
        %2052 = vmatprep.subr.bf16.mxu0 0
        %2053 = vmatpush2.bf16.msra.mxu0 0
        %2054 = vmatprep.subr.bf16.mxu0 0
        %2055 = vmatpush2.bf16.msra.mxu0 0
        %2056 = vmatprep.subr.bf16.mxu0 0
        %2057 = vmatpush2.bf16.msra.mxu0 0
        %2058 = vmatprep.subr.bf16.mxu0 0
        %2059 = vmatpush2.bf16.msra.mxu0 0
        %2060 = vmatprep.subr.bf16.mxu0 0
        %2061 = vmatpush2.bf16.msra.mxu0 0
        %2062 = vmatprep.subr.bf16.mxu0 0
        %2063 = vmatpush2.bf16.msra.mxu0 0
        %2064 = vmatprep.subr.bf16.mxu0 0
        %2065 = vmatpush2.bf16.msra.mxu0 0
        %2066 = vmatprep.subr.bf16.mxu0 0
        %2067 = vmatpush2.bf16.msra.mxu0 0
        %2068 = vmatprep.mubr.bf16.mxu0 0
        %2069 = vmatmul.mubr.bf16.gmra.mxu0 %v1961
        %v2070 = vpop.f32.mrf.mxu0
        %v2071 = vadd.f32 %v1986, %v2070
        %v2072 = vpop.f32.mrf.mxu0
        %v2073 = vpop.f32.mrf.mxu0
        %v2074 = vadd.f32 %v1986, %v2073
        %v2075 = vpop.f32.mrf.mxu0
        %2076 = vmatprep.mubr.bf16.mxu0 0
        %2077 = vmatmul.mubr.bf16.gmra.mxu0 %v1962
        %v2078 = vpop.f32.mrf.mxu0
        %v2079 = vadd.f32 %v1986, %v2078
        %v2080 = vpop.f32.mrf.mxu0
        %v2081 = vpop.f32.mrf.mxu0
        %v2082 = vadd.f32 %v1986, %v2081
        %v2083 = vpop.f32.mrf.mxu0
        %2084 = vmatprep.mubr.bf16.mxu0 0
        %2085 = vmatmul.mubr.bf16.gmra.mxu0 %v1963
        %v2086 = vpop.f32.mrf.mxu0
        %v2087 = vadd.f32 %v1986, %v2086
        %v2088 = vpop.f32.mrf.mxu0
        %v2089 = vpop.f32.mrf.mxu0
        %v2090 = vadd.f32 %v1986, %v2089
        %v2091 = vpop.f32.mrf.mxu0
        %2092 = vmatprep.mubr.bf16.mxu0 0
        %2093 = vmatmul.mubr.bf16.gmra.mxu0 %v1964
        %v2094 = vpop.f32.mrf.mxu0
        %v2095 = vadd.f32 %v1986, %v2094
        %v2096 = vpop.f32.mrf.mxu0
        %v2097 = vpop.f32.mrf.mxu0
        %v2098 = vadd.f32 %v1986, %v2097
        %v2099 = vpop.f32.mrf.mxu0
        %2100 = vdwg.mxu0
        %v2101 = vsub.f32 0.0, %v2071
        %v2102 = vsub.f32 0.0, %v2074
        %v2103 = vsub.f32 0.0, %v2079
        %v2104 = vsub.f32 0.0, %v2082
        %v2105 = vsub.f32 0.0, %v2087
        %v2106 = vsub.f32 0.0, %v2090
        %v2107 = vsub.f32 0.0, %v2095
        %v2108 = vsub.f32 0.0, %v2098
        %v2109 = vmul.f32 %v2101, 1.442695
        %v2110 = vpow.pop %v2109
        %v2111 = vmul.f32 %v2102, 1.442695
        %v2112 = vpow.pop %v2111
        %v2113 = vmul.f32 %v2103, 1.442695
        %v2114 = vpow.pop %v2113
        %v2115 = vmul.f32 %v2104, 1.442695
        %v2116 = vpow.pop %v2115
        %v2117 = vmul.f32 %v2105, 1.442695
        %v2118 = vpow.pop %v2117
        %v2119 = vmul.f32 %v2106, 1.442695
        %v2120 = vpow.pop %v2119
        %v2121 = vmul.f32 %v2107, 1.442695
        %v2122 = vpow.pop %v2121
        %v2123 = vmul.f32 %v2108, 1.442695
        %v2124 = vpow.pop %v2123
        %v2125 = vadd.f32 %v2110, 1.0
        %v2126 = vadd.f32 %v2112, 1.0
        %v2127 = vadd.f32 %v2114, 1.0
        %v2128 = vadd.f32 %v2116, 1.0
        %v2129 = vadd.f32 %v2118, 1.0
        %v2130 = vadd.f32 %v2120, 1.0
        %v2131 = vadd.f32 %v2122, 1.0
        %v2132 = vadd.f32 %v2124, 1.0
        %v2133 = vrcp.pop %v2125
        %v2134 = vrcp.pop %v2126
        %v2135 = vrcp.pop %v2127
        %v2136 = vrcp.pop %v2128
        %v2137 = vrcp.pop %v2129
        %v2138 = vrcp.pop %v2130
        %v2139 = vrcp.pop %v2131
        %v2140 = vrcp.pop %v2132
        %v2141 = vpack.c.bf16 %v2134, %v2133
        %v2142 = vpack.c.bf16 %v2136, %v2135
        %v2143 = vpack.c.bf16 %v2138, %v2137
        %v2144 = vpack.c.bf16 %v2140, %v2139
        %v2149 = vunpack.c.l.b16 %v2141
        %v2150 = vunpack.c.h.b16 %v2141
        %v2151 = vunpack.c.l.b16 %v2142
        %v2152 = vunpack.c.h.b16 %v2142
        %v2153 = vunpack.c.l.b16 %v2143
        %v2154 = vunpack.c.h.b16 %v2143
        %v2155 = vunpack.c.l.b16 %v2144
        %v2156 = vunpack.c.h.b16 %v2144
        %v2157 = vpack.c.b16 %v2149, %v2149
        %v2158 = vpack.c.b16 %v2150, %v2150
        %v2159 = vpack.c.b16 %v2151, %v2151
        %v2160 = vpack.c.b16 %v2152, %v2152
        %v2161 = vpack.c.b16 %v2153, %v2153
        %v2162 = vpack.c.b16 %v2154, %v2154
        %v2163 = vpack.c.b16 %v2155, %v2155
        %v2164 = vpack.c.b16 %v2156, %v2156
        %2173 = vst [vmem:[%s409] sm:$0xf] %v2157
        %2174 = vst [vmem:[%s409 + $0x4] sm:$0xf] %v2158
        %2175 = vst [vmem:[%s409 + $0x8] sm:$0xf] %v2159
        %2176 = vst [vmem:[%s409 + $0xc] sm:$0xf] %v2160
        %2177 = vst [vmem:[%s409 + $0x10] sm:$0xf] %v2161
        %2178 = vst [vmem:[%s409 + $0x14] sm:$0xf] %v2162
        %2179 = vst [vmem:[%s409 + $0x18] sm:$0xf] %v2163
        %2180 = vst [vmem:[%s409 + $0x1c] sm:$0xf] %v2164
        %s2181 = sand.u32 %s230, 1
        %s2182 = scalar_lea.sflag [#allocation4], %s2181
        %s2183 = sand.u32 %s230, 1
        %s2184 = smul.addr %s2183, 32
        %s2185 = scalar_lea.vmem [#allocation11], %s2184
        // Predicated region
        $region77: #{tpu_custom_call.1} parent=55 // pred_check
          %p2186 = pneg %p240
        $region78: #{tpu_custom_call.1} parent=55 // pred_check_branch
          %2188 = sbr.rel (%p2186) target = $region80
        $region79: #{tpu_custom_call.1} parent=55 // pred_region
          %s2189 = smul.u32 8, %s28
          %s2191 = ssub.s32 512, 512
          %2192 = vsyncadd %s2182, %s2191
          %s2193 = smul.addr %s2189, 64
          %s2194 = scalar_lea.hbm %s9, %s2193
          %s2195 = sshll.u32 %s2185, 4
          %s2196 = int_to_ptr.vmem [resolvable:$true] %s2195
          %2201 = dma.vmem_to_hbm [thread:$0]  %s2196, 512, %s2194, %s2182, 64, 64, 4
        $region80: #{tpu_custom_call.1} parent=55 // pred_fallthru
          _
      $region56: #{tpu_custom_call.1} parent=5 // pred_fallthru
        _
      %p2202 = scmp.le.s32.totalorder 2, %s23
      // Predicated region
      $region81: #{tpu_custom_call.1} parent=5 // pred_check
        %p2203 = pneg %p2202
      $region82: #{tpu_custom_call.1} parent=5 // pred_check_branch
        %2205 = sbr.rel (%p2203) target = $region84
      $region83: #{tpu_custom_call.1} parent=5 // pred_region
        %s2206 = ssub.s32 %s23, 2
        // Predicated region
        $region85: #{tpu_custom_call.1} parent=83 // pred_check
          %p2207 = pneg %p246
        $region86: #{tpu_custom_call.1} parent=83 // pred_check_branch
          %2209 = sbr.rel (%p2207) target = $region88
        $region87: #{tpu_custom_call.1} parent=83 // pred_region
          %s2210 = sand.u32 %s231, 1
          %s2211 = scalar_lea.sflag [#allocation4], %s2210
          %s2212 = sand.u32 %s231, 1
          %s2213 = smul.addr %s2212, 32
          %s2214 = scalar_lea.vmem [#allocation11], %s2213
          %2215 = dma.done %s2211, 512
        $region88: #{tpu_custom_call.1} parent=83 // pred_fallthru
          _
      $region84: #{tpu_custom_call.1} parent=5 // pred_fallthru
        _
    $region6: #{tpu_custom_call.1} parent=1 // loop_footer
      %s27 = sadd.s32 1, %s23
    $region7: #{tpu_custom_call.1} parent=1 // loop_footer_branch
      %22 = sbr.rel target = $region3
    $region8: #{tpu_custom_call.1} parent=1 // loop_exit
      _
    %2216 = vsyncpa [#allocation3], 1
    %s2217 = scalar_lea.sflag [#allocation3], 1
    %2218 = vsyncpa %s2217, 1
    %2219 = vsyncpa [#allocation6], 1
    %2220 = vsyncpa [#allocation9], 1
    %2221 = vsyncpa [#allocation4], 1
    %s2222 = scalar_lea.sflag [#allocation4], 1
    %2223 = vsyncpa %s2222, 1

</llo_original>
